<compile_context>
chip_gen: v5e
topology: v5e:2x2
jax: 0.10.0
libtpu: 0.0.40
codegen_flags: <defaults>
</compile_context>

<pallas_src>
import functools

import jax
import jax.numpy as jnp
from jax.experimental import pallas as pl
from jax.experimental.pallas import tpu as pltpu

HIDDEN = 128 * 3      # 384, as in the PyTorch module
LANE = 128
BATCH_ALIGN = 128     # bf16/sublane-safe M alignment; MXU only needs K/N full


def _round_up(x, m):
    return ((x + m - 1) // m) * m


def mlp_kernel(x_ref, w1_ref, b1_ref, w2_ref, b2_ref, w3_ref, b3_ref,
               w4_ref, b4_ref, o_ref):
    # Fused 4-layer MLP hot path: 4 MXU matmuls (bf16 inputs, f32 accumulate),
    # f32 bias adds, 3 ReLUs — everything stays in VMEM/vregs.
    # x arrives f32 and is cast here (VPU work hidden under the MXU) so the
    # wrapper does not need a separate un-hidden astype pass over x in HBM.
    x = x_ref[...].astype(jnp.bfloat16)
    h = jnp.dot(x, w1_ref[...],
                preferred_element_type=jnp.float32) + b1_ref[...]
    h = jnp.maximum(h, 0.0).astype(jnp.bfloat16)
    h = jnp.dot(h, w2_ref[...],
                preferred_element_type=jnp.float32) + b2_ref[...]
    h = jnp.maximum(h, 0.0).astype(jnp.bfloat16)
    h = jnp.dot(h, w3_ref[...],
                preferred_element_type=jnp.float32) + b3_ref[...]
    h = jnp.maximum(h, 0.0).astype(jnp.bfloat16)
    y = jnp.dot(h, w4_ref[...],
                preferred_element_type=jnp.float32) + b4_ref[...]
    o_ref[...] = y.astype(o_ref.dtype)


@functools.partial(jax.jit, static_argnames=("block_b", "out_dtype"))
def mlp_forward(x, params, *, block_b=1024, out_dtype=jnp.float32):
    """x: (B, input_size) float32. params: dict of f32 weights/biases."""
    w1, b1, w2, b2, w3, b3, w4, b4 = (
        params["w1"], params["b1"], params["w2"], params["b2"],
        params["w3"], params["b3"], params["w4"], params["b4"],
    )
    B, in_dim = x.shape
    out_dim = w4.shape[1]

    # --- validate / normalize the static batch-tile cap ---------------------
    if block_b < BATCH_ALIGN:
        raise ValueError(f"block_b must be >= {BATCH_ALIGN}, got {block_b}")
    block_b = _round_up(block_b, BATCH_ALIGN)

    # --- batch tiling: 128-aligned padding, grid >= 2 when possible ---------
    b_aligned = _round_up(B, BATCH_ALIGN)
    tile_b = min(block_b, b_aligned)
    if b_aligned >= 2 * BATCH_ALIGN and b_aligned // tile_b < 2:
        # enough work for two tiles: split so ("parallel",) batch axis can be
        # sharded across v7x's two TensorCores instead of leaving one idle.
        tile_b = _round_up(b_aligned // 2, BATCH_ALIGN)
    b_pad = _round_up(b_aligned, tile_b)
    grid = (b_pad // tile_b,)

    # Batch padding only when actually needed (skipped entirely for
    # tile-aligned batches so there is no extra HBM pass over x).
    if b_pad != B:
        x = jnp.pad(x, ((0, b_pad - B), (0, 0)))

    # --- weights: cast once to bf16 (tiny, <1 MiB total); biases stay f32 ---
    bf16 = jnp.bfloat16
    w1, w2, w3, w4 = (w.astype(bf16) for w in (w1, w2, w3, w4))

    # Weights/biases are fully VMEM-resident every grid step (constant
    # index_map). Default double-buffering costs only ~1 MiB here, so we keep
    # the default pipeline_mode rather than single-buffering.
    def weight_spec(shape):
        return pl.BlockSpec(shape, lambda i: (0, 0))

    # --- VMEM budget: footprint-derived, clamped for v7x's 64 MiB -----------
    f32b = 4
    weight_bytes = (2 * (in_dim * HIDDEN + 2 * HIDDEN * HIDDEN
                         + HIDDEN * out_dim)            # bf16 weights
                    + f32b * (3 * HIDDEN + out_dim))    # f32 biases
    footprint = (2 * tile_b * in_dim * f32b             # x tile, double-buffered
                 + 2 * tile_b * out_dim * f32b          # out tile, double-buffered
                 + 2 * weight_bytes                     # weights, double-buffered
                 + 4 * tile_b * HIDDEN * f32b)          # live f32 intermediates
    vmem_limit = int(min(48 * 1024 * 1024,
                         max(32 * 1024 * 1024, 2 * footprint)))

    out_padded = pl.pallas_call(
        mlp_kernel,
        # Output feature dim is NOT padded: the block covers the full axis
        # (allowed by the (8,128)-or-full-dim rule), avoiding both the 8x
        # write amplification of 16->128 lane padding and a post-kernel
        # slice pass over a padded f32 array.
        out_shape=jax.ShapeDtypeStruct((b_pad, out_dim), out_dtype),
        grid_spec=pltpu.PrefetchScalarGridSpec(
            num_scalar_prefetch=0,
            grid=grid,
            in_specs=[
                pl.BlockSpec((tile_b, in_dim), lambda i: (i, 0)),  # x tile
                weight_spec(w1.shape), weight_spec(b1.shape),
                weight_spec(w2.shape), weight_spec(b2.shape),
                weight_spec(w3.shape), weight_spec(b3.shape),
                weight_spec(w4.shape), weight_spec(b4.shape),
            ],
            out_specs=pl.BlockSpec((tile_b, out_dim), lambda i: (i, 0)),
        ),
        compiler_params=pltpu.CompilerParams(
            dimension_semantics=("parallel",),
            vmem_limit_bytes=vmem_limit,
        ),
    )(x, w1, b1, w2, b2, w3, b3, w4, b4)

    # Strip batch padding only if any was added (no-op pass otherwise).
    if b_pad != B:
        out_padded = out_padded[:B]
    return out_padded


def init_params(key, input_size, output_size):
    """Deterministic PyTorch-style init: U(-1/sqrt(fan_in), 1/sqrt(fan_in))."""
    dims = [(input_size, HIDDEN), (HIDDEN, HIDDEN), (HIDDEN, HIDDEN),
            (HIDDEN, output_size)]
    params = {}
    for idx, (fan_in, fan_out) in enumerate(dims, start=1):
        key, kw, kb = jax.random.split(key, 3)
        bound = 1.0 / jnp.sqrt(float(fan_in))
        # stored as (in, out): kernel computes x @ W + b
        params[f"w{idx}"] = jax.random.uniform(
            kw, (fan_in, fan_out), jnp.float32, -bound, bound)
        # bias kept 2-D (1, out) so the kernel sees a broadcastable row tile
        params[f"b{idx}"] = jax.random.uniform(
            kb, (1, fan_out), jnp.float32, -bound, bound)
    return params


def mlp_reference_f32(x, params):
    h = jnp.maximum(x @ params["w1"] + params["b1"], 0.0)
    h = jnp.maximum(h @ params["w2"] + params["b2"], 0.0)
    h = jnp.maximum(h @ params["w3"] + params["b3"], 0.0)
    return h @ params["w4"] + params["b4"]


def mlp_reference_bf16(x, params):
    """Same bf16-input / f32-accumulate arithmetic as the kernel."""
    bf16 = jnp.bfloat16

    def lin(a, w, b):
        return jnp.dot(a.astype(bf16), w.astype(bf16),
                       preferred_element_type=jnp.float32) + b

    h = jnp.maximum(lin(x, params["w1"], params["b1"]), 0.0)
    h = jnp.maximum(lin(h, params["w2"], params["b2"]), 0.0)
    h = jnp.maximum(lin(h, params["w3"], params["b3"]), 0.0)
    return lin(h, params["w4"], params["b4"])


# TODO(synk): Pushdata Dataset / DataLoader / remember() are host-side data
# plumbing with no role in forward(); intentionally not translated.

if __name__ == "__main__":
    key = jax.random.PRNGKey(0)
    key, kx, kp = jax.random.split(key, 3)

    batch = 8
    input_size = 32
    output_size = 16

    x = jax.random.normal(kx, (batch, input_size), jnp.float32)
    params = init_params(kp, input_size, output_size)

    out = mlp_forward(x, params)
    jax.block_until_ready(out)
    assert out.shape == (batch, output_size)
    assert out.dtype == jnp.float32

    ref_bf16 = mlp_reference_bf16(x, params)   # same bf16/f32-acc arithmetic
    ref_f32 = mlp_reference_f32(x, params)     # pure f32 reference
    assert jnp.allclose(out, ref_bf16, atol=2e-2, rtol=2e-2), \
        "mismatch vs. bf16 reference"
    assert jnp.allclose(out, ref_f32, atol=1e-1, rtol=1e-1), \
        "mismatch vs. f32 reference"

    # Exercise the multi-tile / multi-TensorCore path (grid >= 2) as well.
    kx2 = jax.random.PRNGKey(1)
    x_big = jax.random.normal(kx2, (300, input_size), jnp.float32)
    out_big = mlp_forward(x_big, params)
    jax.block_until_ready(out_big)
    assert out_big.shape == (300, output_size)
    assert jnp.allclose(out_big, mlp_reference_bf16(x_big, params),
                        atol=2e-2, rtol=2e-2), "mismatch on multi-tile batch"

    print("KERNEL_OK")
</pallas_src>

<mosaic_0001>
module attributes {stable_mosaic.version = 11 : i64} {
  func.func @mlp_kernel(%arg0: i32, %arg1: memref<128x32xf32, #tpu.memory_space<vmem>>, %arg2: memref<32x384xbf16, #tpu.memory_space<vmem>>, %arg3: memref<1x384xf32, #tpu.memory_space<vmem>>, %arg4: memref<384x384xbf16, #tpu.memory_space<vmem>>, %arg5: memref<1x384xf32, #tpu.memory_space<vmem>>, %arg6: memref<384x384xbf16, #tpu.memory_space<vmem>>, %arg7: memref<1x384xf32, #tpu.memory_space<vmem>>, %arg8: memref<384x16xbf16, #tpu.memory_space<vmem>>, %arg9: memref<1x16xf32, #tpu.memory_space<vmem>>, %arg10: memref<128x16xf32, #tpu.memory_space<vmem>>) attributes {dimension_semantics = [#tpu.dimension_semantics<parallel>], iteration_bounds = array<i64: 1>, scalar_prefetch = 0 : i64, scratch_operands = 0 : i64, tpu.core_type = #tpu.core_type<tc>, window_params = [{transform_indices = @transform_0, window_bounds = array<i64: 128, 32>}, {pipeline_mode = #tpu.pipeline_mode<synchronous>, transform_indices = @transform_1, window_bounds = array<i64: 32, 384>}, {pipeline_mode = #tpu.pipeline_mode<synchronous>, transform_indices = @transform_2, window_bounds = array<i64: 1, 384>}, {pipeline_mode = #tpu.pipeline_mode<synchronous>, transform_indices = @transform_3, window_bounds = array<i64: 384, 384>}, {pipeline_mode = #tpu.pipeline_mode<synchronous>, transform_indices = @transform_4, window_bounds = array<i64: 1, 384>}, {pipeline_mode = #tpu.pipeline_mode<synchronous>, transform_indices = @transform_5, window_bounds = array<i64: 384, 384>}, {pipeline_mode = #tpu.pipeline_mode<synchronous>, transform_indices = @transform_6, window_bounds = array<i64: 1, 384>}, {pipeline_mode = #tpu.pipeline_mode<synchronous>, transform_indices = @transform_7, window_bounds = array<i64: 384, 16>}, {pipeline_mode = #tpu.pipeline_mode<synchronous>, transform_indices = @transform_8, window_bounds = array<i64: 1, 16>}, {transform_indices = @transform_9, window_bounds = array<i64: 128, 16>}]} {
    %c0 = arith.constant 0 : index
    %c0_0 = arith.constant 0 : index
    %0 = vector.load %arg1[%c0, %c0_0] : memref<128x32xf32, #tpu.memory_space<vmem>>, vector<128x32xf32>
    %1 = arith.truncf %0 : vector<128x32xf32> to vector<128x32xbf16>
    %c0_1 = arith.constant 0 : index
    %c0_2 = arith.constant 0 : index
    %2 = vector.load %arg2[%c0_1, %c0_2] : memref<32x384xbf16, #tpu.memory_space<vmem>>, vector<32x384xbf16>
    %cst = arith.constant dense<0.000000e+00> : vector<128x384xf32>
    %3 = tpu.matmul %1, %2, %cst {dimension_numbers = #tpu.dot_dimension_numbers<[1], [0], [0], [1], [0, 0, 1, 1], [], []>} : vector<128x32xbf16>, vector<32x384xbf16>, vector<128x384xf32> -> vector<128x384xf32>
    %c0_3 = arith.constant 0 : index
    %c0_4 = arith.constant 0 : index
    %4 = vector.load %arg3[%c0_3, %c0_4] : memref<1x384xf32, #tpu.memory_space<vmem>>, vector<1x384xf32>
    %5 = vector.broadcast %4 : vector<1x384xf32> to vector<128x384xf32>
    %6 = arith.addf %3, %5 : vector<128x384xf32>
    %cst_5 = arith.constant 0.000000e+00 : f32
    %7 = vector.broadcast %cst_5 : f32 to vector<128x384xf32>
    %8 = arith.maximumf %6, %7 : vector<128x384xf32>
    %9 = arith.truncf %8 : vector<128x384xf32> to vector<128x384xbf16>
    %c0_6 = arith.constant 0 : index
    %c0_7 = arith.constant 0 : index
    %10 = vector.load %arg4[%c0_6, %c0_7] : memref<384x384xbf16, #tpu.memory_space<vmem>>, vector<384x384xbf16>
    %cst_8 = arith.constant dense<0.000000e+00> : vector<128x384xf32>
    %11 = tpu.matmul %9, %10, %cst_8 {dimension_numbers = #tpu.dot_dimension_numbers<[1], [0], [0], [1], [0, 0, 1, 1], [], []>} : vector<128x384xbf16>, vector<384x384xbf16>, vector<128x384xf32> -> vector<128x384xf32>
    %c0_9 = arith.constant 0 : index
    %c0_10 = arith.constant 0 : index
    %12 = vector.load %arg5[%c0_9, %c0_10] : memref<1x384xf32, #tpu.memory_space<vmem>>, vector<1x384xf32>
    %13 = vector.broadcast %12 : vector<1x384xf32> to vector<128x384xf32>
    %14 = arith.addf %11, %13 : vector<128x384xf32>
    %cst_11 = arith.constant 0.000000e+00 : f32
    %15 = vector.broadcast %cst_11 : f32 to vector<128x384xf32>
    %16 = arith.maximumf %14, %15 : vector<128x384xf32>
    %17 = arith.truncf %16 : vector<128x384xf32> to vector<128x384xbf16>
    %c0_12 = arith.constant 0 : index
    %c0_13 = arith.constant 0 : index
    %18 = vector.load %arg6[%c0_12, %c0_13] : memref<384x384xbf16, #tpu.memory_space<vmem>>, vector<384x384xbf16>
    %cst_14 = arith.constant dense<0.000000e+00> : vector<128x384xf32>
    %19 = tpu.matmul %17, %18, %cst_14 {dimension_numbers = #tpu.dot_dimension_numbers<[1], [0], [0], [1], [0, 0, 1, 1], [], []>} : vector<128x384xbf16>, vector<384x384xbf16>, vector<128x384xf32> -> vector<128x384xf32>
    %c0_15 = arith.constant 0 : index
    %c0_16 = arith.constant 0 : index
    %20 = vector.load %arg7[%c0_15, %c0_16] : memref<1x384xf32, #tpu.memory_space<vmem>>, vector<1x384xf32>
    %21 = vector.broadcast %20 : vector<1x384xf32> to vector<128x384xf32>
    %22 = arith.addf %19, %21 : vector<128x384xf32>
    %cst_17 = arith.constant 0.000000e+00 : f32
    %23 = vector.broadcast %cst_17 : f32 to vector<128x384xf32>
    %24 = arith.maximumf %22, %23 : vector<128x384xf32>
    %25 = arith.truncf %24 : vector<128x384xf32> to vector<128x384xbf16>
    %c0_18 = arith.constant 0 : index
    %c0_19 = arith.constant 0 : index
    %26 = vector.load %arg8[%c0_18, %c0_19] : memref<384x16xbf16, #tpu.memory_space<vmem>>, vector<384x16xbf16>
    %cst_20 = arith.constant dense<0.000000e+00> : vector<128x16xf32>
    %27 = tpu.matmul %25, %26, %cst_20 {dimension_numbers = #tpu.dot_dimension_numbers<[1], [0], [0], [1], [0, 0, 1, 1], [], []>} : vector<128x384xbf16>, vector<384x16xbf16>, vector<128x16xf32> -> vector<128x16xf32>
    %c0_21 = arith.constant 0 : index
    %c0_22 = arith.constant 0 : index
    %28 = vector.load %arg9[%c0_21, %c0_22] : memref<1x16xf32, #tpu.memory_space<vmem>>, vector<1x16xf32>
    %29 = vector.broadcast %28 : vector<1x16xf32> to vector<128x16xf32>
    %30 = arith.addf %27, %29 : vector<128x16xf32>
    %c0_23 = arith.constant 0 : index
    %c0_24 = arith.constant 0 : index
    %31 = vector.load %arg10[%c0_23, %c0_24] : memref<128x16xf32, #tpu.memory_space<vmem>>, vector<128x16xf32>
    tpu.vector_store %arg10[%c0_23, %c0_24], %30 {strides = array<i32>} : memref<128x16xf32, #tpu.memory_space<vmem>>, vector<128x16xf32>,
    return
  }
  func.func @transform_0(%arg0: i32) -> (i32, i32) {
    %c0_i32 = arith.constant 0 : i32
    %c0_i32_0 = arith.constant 0 : i32
    return %arg0, %c0_i32 : i32, i32
  }
  func.func @transform_1(%arg0: i32) -> (i32, i32) {
    %c0_i32 = arith.constant 0 : i32
    %c0_i32_0 = arith.constant 0 : i32
    %c0_i32_1 = arith.constant 0 : i32
    return %c0_i32, %c0_i32_0 : i32, i32
  }
  func.func @transform_2(%arg0: i32) -> (i32, i32) {
    %c0_i32 = arith.constant 0 : i32
    %c0_i32_0 = arith.constant 0 : i32
    %c0_i32_1 = arith.constant 0 : i32
    return %c0_i32, %c0_i32_0 : i32, i32
  }
  func.func @transform_3(%arg0: i32) -> (i32, i32) {
    %c0_i32 = arith.constant 0 : i32
    %c0_i32_0 = arith.constant 0 : i32
    %c0_i32_1 = arith.constant 0 : i32
    return %c0_i32, %c0_i32_0 : i32, i32
  }
  func.func @transform_4(%arg0: i32) -> (i32, i32) {
    %c0_i32 = arith.constant 0 : i32
    %c0_i32_0 = arith.constant 0 : i32
    %c0_i32_1 = arith.constant 0 : i32
    return %c0_i32, %c0_i32_0 : i32, i32
  }
  func.func @transform_5(%arg0: i32) -> (i32, i32) {
    %c0_i32 = arith.constant 0 : i32
    %c0_i32_0 = arith.constant 0 : i32
    %c0_i32_1 = arith.constant 0 : i32
    return %c0_i32, %c0_i32_0 : i32, i32
  }
  func.func @transform_6(%arg0: i32) -> (i32, i32) {
    %c0_i32 = arith.constant 0 : i32
    %c0_i32_0 = arith.constant 0 : i32
    %c0_i32_1 = arith.constant 0 : i32
    return %c0_i32, %c0_i32_0 : i32, i32
  }
  func.func @transform_7(%arg0: i32) -> (i32, i32) {
    %c0_i32 = arith.constant 0 : i32
    %c0_i32_0 = arith.constant 0 : i32
    %c0_i32_1 = arith.constant 0 : i32
    return %c0_i32, %c0_i32_0 : i32, i32
  }
  func.func @transform_8(%arg0: i32) -> (i32, i32) {
    %c0_i32 = arith.constant 0 : i32
    %c0_i32_0 = arith.constant 0 : i32
    %c0_i32_1 = arith.constant 0 : i32
    return %c0_i32, %c0_i32_0 : i32, i32
  }
  func.func @transform_9(%arg0: i32) -> (i32, i32) {
    %c0_i32 = arith.constant 0 : i32
    %c0_i32_0 = arith.constant 0 : i32
    return %arg0, %c0_i32 : i32, i32
  }
}

</mosaic_0001>

<llo_original>
// kernel: mlp_forward.1
$region0: #{mlp_forward.1}
  #allocation0 [shape = 'u32[]', space=smem, size = 0x4, offset = 0x4, fixed_abs, tag = 'smem constant byte address 0x4 - core index']
  #allocation1 [shape = 'u32[72,128]{1,0:T(1,128)}', space=vmem, size = 0x9000, scoped, tag = 'internal scratch']
  %s0 = inlined_call_operand.vmem [shape: f32[128,32], index: 0, kind: input, shape index: {}]
  %s1 = inlined_call_operand.vmem [shape: bf16[32,384], index: 1, kind: input, shape index: {}]
  %s2 = inlined_call_operand.vmem [shape: f32[1,384], index: 2, kind: input, shape index: {}]
  %s3 = inlined_call_operand.vmem [shape: bf16[384,384], index: 3, kind: input, shape index: {}]
  %s4 = inlined_call_operand.vmem [shape: f32[1,384], index: 4, kind: input, shape index: {}]
  %s5 = inlined_call_operand.vmem [shape: bf16[384,384], index: 5, kind: input, shape index: {}]
  %s6 = inlined_call_operand.vmem [shape: f32[1,384], index: 6, kind: input, shape index: {}]
  %s7 = inlined_call_operand.vmem [shape: bf16[384,16], index: 7, kind: input, shape index: {}]
  %s8 = inlined_call_operand.vmem [shape: f32[1,16], index: 8, kind: input, shape index: {}]
  %s9 = inlined_call_operand.vmem [shape: f32[128,16], index: 9, kind: output, shape index: {}]
  %s10 = sld [smem:[#allocation0]]
  $region46: #{mlp_forward.1} parent=0
    _
  %s12 = ssub.s32 1, %s10
  %s13 = scalar_select 0, %s12, %s10
  // Predicated region
  $region2: #{mlp_forward.1} parent=0 // pred_check
    _
  $region3: #{mlp_forward.1} parent=0 // pred_check_branch
    %15 = sbr.rel (0) target = $region5
  $region4: #{mlp_forward.1} parent=0 // pred_region
    _
  $region5: #{mlp_forward.1} parent=0 // pred_fallthru
    _
  // Predicated region
  $region6: #{mlp_forward.1} parent=0 // pred_check
    _
  $region7: #{mlp_forward.1} parent=0 // pred_check_branch
    %17 = sbr.rel (0) target = $region9
  $region8: #{mlp_forward.1} parent=0 // pred_region
    _
  $region9: #{mlp_forward.1} parent=0 // pred_fallthru
    _
  // Predicated region
  $region10: #{mlp_forward.1} parent=0 // pred_check
    _
  $region11: #{mlp_forward.1} parent=0 // pred_check_branch
    %19 = sbr.rel (0) target = $region13
  $region12: #{mlp_forward.1} parent=0 // pred_region
    _
  $region13: #{mlp_forward.1} parent=0 // pred_fallthru
    _
  // Predicated region
  $region14: #{mlp_forward.1} parent=0 // pred_check
    _
  $region15: #{mlp_forward.1} parent=0 // pred_check_branch
    %21 = sbr.rel (0) target = $region17
  $region16: #{mlp_forward.1} parent=0 // pred_region
    _
  $region17: #{mlp_forward.1} parent=0 // pred_fallthru
    _
  // Predicated region
  $region18: #{mlp_forward.1} parent=0 // pred_check
    _
  $region19: #{mlp_forward.1} parent=0 // pred_check_branch
    %23 = sbr.rel (0) target = $region21
  $region20: #{mlp_forward.1} parent=0 // pred_region
    _
  $region21: #{mlp_forward.1} parent=0 // pred_fallthru
    _
  // Predicated region
  $region22: #{mlp_forward.1} parent=0 // pred_check
    _
  $region23: #{mlp_forward.1} parent=0 // pred_check_branch
    %25 = sbr.rel (0) target = $region25
  $region24: #{mlp_forward.1} parent=0 // pred_region
    _
  $region25: #{mlp_forward.1} parent=0 // pred_fallthru
    _
  // Predicated region
  $region26: #{mlp_forward.1} parent=0 // pred_check
    _
  $region27: #{mlp_forward.1} parent=0 // pred_check_branch
    %27 = sbr.rel (0) target = $region29
  $region28: #{mlp_forward.1} parent=0 // pred_region
    _
  $region29: #{mlp_forward.1} parent=0 // pred_fallthru
    _
  // Predicated region
  $region30: #{mlp_forward.1} parent=0 // pred_check
    _
  $region31: #{mlp_forward.1} parent=0 // pred_check_branch
    %29 = sbr.rel (0) target = $region33
  $region32: #{mlp_forward.1} parent=0 // pred_region
    _
  $region33: #{mlp_forward.1} parent=0 // pred_fallthru
    _
  // Predicated region
  $region34: #{mlp_forward.1} parent=0 // pred_check
    _
  $region35: #{mlp_forward.1} parent=0 // pred_check_branch
    %31 = sbr.rel (0) target = $region37
  $region36: #{mlp_forward.1} parent=0 // pred_region
    _
  $region37: #{mlp_forward.1} parent=0 // pred_fallthru
    _
  %v33 = vld [vmem:[%s0] sm:$0xff]
  %v34 = vld [vmem:[%s0 + $0x8] sm:$0xff]
  %v35 = vld [vmem:[%s0 + $0x10] sm:$0xff]
  %v36 = vld [vmem:[%s0 + $0x18] sm:$0xff]
  %v37 = vld [vmem:[%s0 + $0x20] sm:$0xff]
  %v38 = vld [vmem:[%s0 + $0x28] sm:$0xff]
  %v39 = vld [vmem:[%s0 + $0x30] sm:$0xff]
  %v40 = vld [vmem:[%s0 + $0x38] sm:$0xff]
  %v41 = vld [vmem:[%s0 + $0x40] sm:$0xff]
  %v42 = vld [vmem:[%s0 + $0x48] sm:$0xff]
  %v43 = vld [vmem:[%s0 + $0x50] sm:$0xff]
  %v44 = vld [vmem:[%s0 + $0x58] sm:$0xff]
  %v45 = vld [vmem:[%s0 + $0x60] sm:$0xff]
  %v46 = vld [vmem:[%s0 + $0x68] sm:$0xff]
  %v47 = vld [vmem:[%s0 + $0x70] sm:$0xff]
  %v48 = vld [vmem:[%s0 + $0x78] sm:$0xff]
  %v49 = vpack.c.bf16 %v34, %v33
  %v50 = vpack.c.bf16 %v36, %v35
  %v51 = vpack.c.bf16 %v38, %v37
  %v52 = vpack.c.bf16 %v40, %v39
  %v53 = vpack.c.bf16 %v42, %v41
  %v54 = vpack.c.bf16 %v44, %v43
  %v55 = vpack.c.bf16 %v46, %v45
  %v56 = vpack.c.bf16 %v48, %v47
  %v57 = vld [vmem:[%s1] sm:$0xff]
  %v58 = vld [vmem:[%s1 + $0x8] sm:$0xf]
  %v59 = vld [vmem:[%s1 + $0xc] sm:$0xff]
  %v60 = vld [vmem:[%s1 + $0x14] sm:$0xf]
  %v61 = vld [vmem:[%s1 + $0x18] sm:$0xff]
  %v62 = vld [vmem:[%s1 + $0x20] sm:$0xf]
  %v63 = vld [vmem:[%s1 + $0x24] sm:$0xff]
  %v64 = vld [vmem:[%s1 + $0x2c] sm:$0xf]
  %v65 = vld [vmem:[%s2] sm:$0x7]
  %v67 = vperm.slane %v65, 0
  %v68 = vperm.slane %v65, 1
  %v69 = vperm.slane %v65, 2
  %v81 = vunpack.c.l.b16 %v57
  %v82 = vunpack.c.h.b16 %v57
  %v83 = vunpack.c.l.b16 %v58
  %v84 = vunpack.c.l.b16 %v59
  %v85 = vunpack.c.h.b16 %v59
  %v86 = vunpack.c.l.b16 %v60
  %v87 = vunpack.c.l.b16 %v61
  %v88 = vunpack.c.h.b16 %v61
  %v89 = vunpack.c.l.b16 %v62
  %v90 = vunpack.c.l.b16 %v63
  %v91 = vunpack.c.h.b16 %v63
  %v92 = vunpack.c.l.b16 %v64
  %v93 = vpack.c.b16 %v84, %v81
  %v94 = vpack.c.b16 %v85, %v82
  %v95 = vpack.c.b16 %v86, %v83
  %v96 = vpack.c.b16 %v90, %v87
  %v97 = vpack.c.b16 %v91, %v88
  %v98 = vpack.c.b16 %v92, %v89
  %vm105 = vcmask 261120
  %v107 = vsel %vm105, %v49, 0
  %v110 = vsel %vm105, %v50, 0
  %v113 = vsel %vm105, %v51, 0
  %v116 = vsel %vm105, %v52, 0
  %v119 = vsel %vm105, %v53, 0
  %v122 = vsel %vm105, %v54, 0
  %v125 = vsel %vm105, %v55, 0
  %v128 = vsel %vm105, %v56, 0
  %130 = vmatpush.bf16.msra.mxu0 0
  %131 = vmatpush.bf16.msra.mxu0 0
  %132 = vmatpush.bf16.msra.mxu0 0
  %133 = vmatpush.bf16.msra.mxu0 0
  %134 = vmatpush.bf16.msra.mxu0 0
  %135 = vmatpush.bf16.msra.mxu0 0
  %136 = vmatpush.bf16.msra.mxu0 %v96
  %137 = vmatpush.bf16.msra.mxu0 %v93
  %138 = vmatmul.bf16.gmra.mxu0 %v107
  %v139 = vpop.f32.mrf.mxu0
  %v140 = vadd.f32 %v67, %v139
  %v141 = vpop.f32.mrf.mxu0
  %v142 = vadd.f32 %v67, %v141
  %143 = vmatmul.bf16.gmra.mxu0 %v110
  %v144 = vpop.f32.mrf.mxu0
  %v145 = vadd.f32 %v67, %v144
  %v146 = vpop.f32.mrf.mxu0
  %v147 = vadd.f32 %v67, %v146
  %148 = vmatmul.bf16.gmra.mxu0 %v113
  %v149 = vpop.f32.mrf.mxu0
  %v150 = vadd.f32 %v67, %v149
  %v151 = vpop.f32.mrf.mxu0
  %v152 = vadd.f32 %v67, %v151
  %153 = vmatmul.bf16.gmra.mxu0 %v116
  %v154 = vpop.f32.mrf.mxu0
  %v155 = vadd.f32 %v67, %v154
  %v156 = vpop.f32.mrf.mxu0
  %v157 = vadd.f32 %v67, %v156
  %158 = vmatmul.bf16.gmra.mxu0 %v119
  %v159 = vpop.f32.mrf.mxu0
  %v160 = vadd.f32 %v67, %v159
  %v161 = vpop.f32.mrf.mxu0
  %v162 = vadd.f32 %v67, %v161
  %163 = vmatmul.bf16.gmra.mxu0 %v122
  %v164 = vpop.f32.mrf.mxu0
  %v165 = vadd.f32 %v67, %v164
  %v166 = vpop.f32.mrf.mxu0
  %v167 = vadd.f32 %v67, %v166
  %168 = vmatmul.bf16.gmra.mxu0 %v125
  %v169 = vpop.f32.mrf.mxu0
  %v170 = vadd.f32 %v67, %v169
  %v171 = vpop.f32.mrf.mxu0
  %v172 = vadd.f32 %v67, %v171
  %173 = vmatmul.bf16.gmra.mxu0 %v128
  %v174 = vpop.f32.mrf.mxu0
  %v175 = vadd.f32 %v67, %v174
  %v176 = vpop.f32.mrf.mxu0
  %v177 = vadd.f32 %v67, %v176
  %178 = vdwg.mxu0
  %179 = vmatpush.bf16.msra.mxu0 0
  %180 = vmatpush.bf16.msra.mxu0 0
  %181 = vmatpush.bf16.msra.mxu0 0
  %182 = vmatpush.bf16.msra.mxu0 0
  %183 = vmatpush.bf16.msra.mxu0 0
  %184 = vmatpush.bf16.msra.mxu0 0
  %185 = vmatpush.bf16.msra.mxu0 %v97
  %186 = vmatpush.bf16.msra.mxu0 %v94
  %187 = vmatmul.bf16.gmra.mxu0 %v107
  %v188 = vpop.f32.mrf.mxu0
  %v189 = vadd.f32 %v68, %v188
  %v190 = vpop.f32.mrf.mxu0
  %v191 = vadd.f32 %v68, %v190
  %192 = vmatmul.bf16.gmra.mxu0 %v110
  %v193 = vpop.f32.mrf.mxu0
  %v194 = vadd.f32 %v68, %v193
  %v195 = vpop.f32.mrf.mxu0
  %v196 = vadd.f32 %v68, %v195
  %197 = vmatmul.bf16.gmra.mxu0 %v113
  %v198 = vpop.f32.mrf.mxu0
  %v199 = vadd.f32 %v68, %v198
  %v200 = vpop.f32.mrf.mxu0
  %v201 = vadd.f32 %v68, %v200
  %202 = vmatmul.bf16.gmra.mxu0 %v116
  %v203 = vpop.f32.mrf.mxu0
  %v204 = vadd.f32 %v68, %v203
  %v205 = vpop.f32.mrf.mxu0
  %v206 = vadd.f32 %v68, %v205
  %207 = vmatmul.bf16.gmra.mxu0 %v119
  %v208 = vpop.f32.mrf.mxu0
  %v209 = vadd.f32 %v68, %v208
  %v210 = vpop.f32.mrf.mxu0
  %v211 = vadd.f32 %v68, %v210
  %212 = vmatmul.bf16.gmra.mxu0 %v122
  %v213 = vpop.f32.mrf.mxu0
  %v214 = vadd.f32 %v68, %v213
  %v215 = vpop.f32.mrf.mxu0
  %v216 = vadd.f32 %v68, %v215
  %217 = vmatmul.bf16.gmra.mxu0 %v125
  %v218 = vpop.f32.mrf.mxu0
  %v219 = vadd.f32 %v68, %v218
  %v220 = vpop.f32.mrf.mxu0
  %v221 = vadd.f32 %v68, %v220
  %222 = vmatmul.bf16.gmra.mxu0 %v128
  %v223 = vpop.f32.mrf.mxu0
  %v224 = vadd.f32 %v68, %v223
  %v225 = vpop.f32.mrf.mxu0
  %v226 = vadd.f32 %v68, %v225
  %227 = vdwg.mxu0
  %228 = vmatpush.bf16.msra.mxu0 0
  %229 = vmatpush.bf16.msra.mxu0 0
  %230 = vmatpush.bf16.msra.mxu0 0
  %231 = vmatpush.bf16.msra.mxu0 0
  %232 = vmatpush.bf16.msra.mxu0 0
  %233 = vmatpush.bf16.msra.mxu0 0
  %234 = vmatpush.bf16.msra.mxu0 %v98
  %235 = vmatpush.bf16.msra.mxu0 %v95
  %236 = vmatmul.bf16.gmra.mxu0 %v107
  %v237 = vpop.f32.mrf.mxu0
  %v238 = vadd.f32 %v69, %v237
  %v239 = vpop.f32.mrf.mxu0
  %v240 = vadd.f32 %v69, %v239
  %241 = vmatmul.bf16.gmra.mxu0 %v110
  %v242 = vpop.f32.mrf.mxu0
  %v243 = vadd.f32 %v69, %v242
  %v244 = vpop.f32.mrf.mxu0
  %v245 = vadd.f32 %v69, %v244
  %246 = vmatmul.bf16.gmra.mxu0 %v113
  %v247 = vpop.f32.mrf.mxu0
  %v248 = vadd.f32 %v69, %v247
  %v249 = vpop.f32.mrf.mxu0
  %v250 = vadd.f32 %v69, %v249
  %251 = vmatmul.bf16.gmra.mxu0 %v116
  %v252 = vpop.f32.mrf.mxu0
  %v253 = vadd.f32 %v69, %v252
  %v254 = vpop.f32.mrf.mxu0
  %v255 = vadd.f32 %v69, %v254
  %256 = vmatmul.bf16.gmra.mxu0 %v119
  %v257 = vpop.f32.mrf.mxu0
  %v258 = vadd.f32 %v69, %v257
  %v259 = vpop.f32.mrf.mxu0
  %v260 = vadd.f32 %v69, %v259
  %261 = vmatmul.bf16.gmra.mxu0 %v122
  %v262 = vpop.f32.mrf.mxu0
  %v263 = vadd.f32 %v69, %v262
  %v264 = vpop.f32.mrf.mxu0
  %v265 = vadd.f32 %v69, %v264
  %266 = vmatmul.bf16.gmra.mxu0 %v125
  %v267 = vpop.f32.mrf.mxu0
  %v268 = vadd.f32 %v69, %v267
  %v269 = vpop.f32.mrf.mxu0
  %v270 = vadd.f32 %v69, %v269
  %271 = vmatmul.bf16.gmra.mxu0 %v128
  %v272 = vpop.f32.mrf.mxu0
  %v273 = vadd.f32 %v69, %v272
  %v274 = vpop.f32.mrf.mxu0
  %v275 = vadd.f32 %v69, %v274
  %276 = vdwg.mxu0
  %v277 = vmax.f32 %v140, 0.0
  %v278 = vmax.f32 %v189, 0.0
  %v279 = vmax.f32 %v238, 0.0
  %v280 = vmax.f32 %v142, 0.0
  %v281 = vmax.f32 %v191, 0.0
  %v282 = vmax.f32 %v240, 0.0
  %v283 = vmax.f32 %v145, 0.0
  %v284 = vmax.f32 %v194, 0.0
  %v285 = vmax.f32 %v243, 0.0
  %v286 = vmax.f32 %v147, 0.0
  %v287 = vmax.f32 %v196, 0.0
  %v288 = vmax.f32 %v245, 0.0
  %v289 = vmax.f32 %v150, 0.0
  %v290 = vmax.f32 %v199, 0.0
  %v291 = vmax.f32 %v248, 0.0
  %v292 = vmax.f32 %v152, 0.0
  %v293 = vmax.f32 %v201, 0.0
  %v294 = vmax.f32 %v250, 0.0
  %v295 = vmax.f32 %v155, 0.0
  %v296 = vmax.f32 %v204, 0.0
  %v297 = vmax.f32 %v253, 0.0
  %v298 = vmax.f32 %v157, 0.0
  %v299 = vmax.f32 %v206, 0.0
  %v300 = vmax.f32 %v255, 0.0
  %v301 = vmax.f32 %v160, 0.0
  %v302 = vmax.f32 %v209, 0.0
  %v303 = vmax.f32 %v258, 0.0
  %v304 = vmax.f32 %v162, 0.0
  %v305 = vmax.f32 %v211, 0.0
  %v306 = vmax.f32 %v260, 0.0
  %v307 = vmax.f32 %v165, 0.0
  %v308 = vmax.f32 %v214, 0.0
  %v309 = vmax.f32 %v263, 0.0
  %v310 = vmax.f32 %v167, 0.0
  %v311 = vmax.f32 %v216, 0.0
  %v312 = vmax.f32 %v265, 0.0
  %v313 = vmax.f32 %v170, 0.0
  %v314 = vmax.f32 %v219, 0.0
  %v315 = vmax.f32 %v268, 0.0
  %v316 = vmax.f32 %v172, 0.0
  %v317 = vmax.f32 %v221, 0.0
  %v318 = vmax.f32 %v270, 0.0
  %v319 = vmax.f32 %v175, 0.0
  %v320 = vmax.f32 %v224, 0.0
  %v321 = vmax.f32 %v273, 0.0
  %v322 = vmax.f32 %v177, 0.0
  %v323 = vmax.f32 %v226, 0.0
  %v324 = vmax.f32 %v275, 0.0
  %v325 = vpack.c.bf16 %v280, %v277
  %v326 = vpack.c.bf16 %v281, %v278
  %v327 = vpack.c.bf16 %v282, %v279
  %v328 = vpack.c.bf16 %v286, %v283
  %v329 = vpack.c.bf16 %v287, %v284
  %v330 = vpack.c.bf16 %v288, %v285
  %v331 = vpack.c.bf16 %v292, %v289
  %v332 = vpack.c.bf16 %v293, %v290
  %v333 = vpack.c.bf16 %v294, %v291
  %v334 = vpack.c.bf16 %v298, %v295
  %v335 = vpack.c.bf16 %v299, %v296
  %v336 = vpack.c.bf16 %v300, %v297
  %v337 = vpack.c.bf16 %v304, %v301
  %v338 = vpack.c.bf16 %v305, %v302
  %v339 = vpack.c.bf16 %v306, %v303
  %v340 = vpack.c.bf16 %v310, %v307
  %v341 = vpack.c.bf16 %v311, %v308
  %v342 = vpack.c.bf16 %v312, %v309
  %v343 = vpack.c.bf16 %v316, %v313
  %v344 = vpack.c.bf16 %v317, %v314
  %v345 = vpack.c.bf16 %v318, %v315
  %v346 = vpack.c.bf16 %v322, %v319
  %v347 = vpack.c.bf16 %v323, %v320
  %v348 = vpack.c.bf16 %v324, %v321
  %v349 = vld [vmem:[%s3] sm:$0xff]
  %v350 = vld [vmem:[%s3 + $0x8] sm:$0xf]
  %v351 = vld [vmem:[%s3 + $0xc] sm:$0xff]
  %v352 = vld [vmem:[%s3 + $0x14] sm:$0xf]
  %v353 = vld [vmem:[%s3 + $0x18] sm:$0xff]
  %v354 = vld [vmem:[%s3 + $0x20] sm:$0xf]
  %v355 = vld [vmem:[%s3 + $0x24] sm:$0xff]
  %v356 = vld [vmem:[%s3 + $0x2c] sm:$0xf]
  %v357 = vld [vmem:[%s3 + $0x30] sm:$0xff]
  %v358 = vld [vmem:[%s3 + $0x38] sm:$0xf]
  %v359 = vld [vmem:[%s3 + $0x3c] sm:$0xff]
  %v360 = vld [vmem:[%s3 + $0x44] sm:$0xf]
  %v361 = vld [vmem:[%s3 + $0x48] sm:$0xff]
  %v362 = vld [vmem:[%s3 + $0x50] sm:$0xf]
  %v363 = vld [vmem:[%s3 + $0x54] sm:$0xff]
  %v364 = vld [vmem:[%s3 + $0x5c] sm:$0xf]
  %v365 = vld [vmem:[%s3 + $0x60] sm:$0xff]
  %v366 = vld [vmem:[%s3 + $0x68] sm:$0xf]
  %v367 = vld [vmem:[%s3 + $0x6c] sm:$0xff]
  %v368 = vld [vmem:[%s3 + $0x74] sm:$0xf]
  %v369 = vld [vmem:[%s3 + $0x78] sm:$0xff]
  %v370 = vld [vmem:[%s3 + $0x80] sm:$0xf]
  %v371 = vld [vmem:[%s3 + $0x84] sm:$0xff]
  %v372 = vld [vmem:[%s3 + $0x8c] sm:$0xf]
  %v373 = vld [vmem:[%s3 + $0x90] sm:$0xff]
  %v374 = vld [vmem:[%s3 + $0x98] sm:$0xf]
  %v375 = vld [vmem:[%s3 + $0x9c] sm:$0xff]
  %v376 = vld [vmem:[%s3 + $0xa4] sm:$0xf]
  %v377 = vld [vmem:[%s3 + $0xa8] sm:$0xff]
  %v378 = vld [vmem:[%s3 + $0xb0] sm:$0xf]
  %v379 = vld [vmem:[%s3 + $0xb4] sm:$0xff]
  %v380 = vld [vmem:[%s3 + $0xbc] sm:$0xf]
  %v381 = vld [vmem:[%s3 + $0xc0] sm:$0xff]
  %v382 = vld [vmem:[%s3 + $0xc8] sm:$0xf]
  %v383 = vld [vmem:[%s3 + $0xcc] sm:$0xff]
  %v384 = vld [vmem:[%s3 + $0xd4] sm:$0xf]
  %v385 = vld [vmem:[%s3 + $0xd8] sm:$0xff]
  %v386 = vld [vmem:[%s3 + $0xe0] sm:$0xf]
  %v387 = vld [vmem:[%s3 + $0xe4] sm:$0xff]
  %v388 = vld [vmem:[%s3 + $0xec] sm:$0xf]
  %v389 = vld [vmem:[%s3 + $0xf0] sm:$0xff]
  %v390 = vld [vmem:[%s3 + $0xf8] sm:$0xf]
  %v391 = vld [vmem:[%s3 + $0xfc] sm:$0xff]
  %v392 = vld [vmem:[%s3 + $0x104] sm:$0xf]
  %v393 = vld [vmem:[%s3 + $0x108] sm:$0xff]
  %v394 = vld [vmem:[%s3 + $0x110] sm:$0xf]
  %v395 = vld [vmem:[%s3 + $0x114] sm:$0xff]
  %v396 = vld [vmem:[%s3 + $0x11c] sm:$0xf]
  %v397 = vld [vmem:[%s3 + $0x120] sm:$0xff]
  %v398 = vld [vmem:[%s3 + $0x128] sm:$0xf]
  %v399 = vld [vmem:[%s3 + $0x12c] sm:$0xff]
  %v400 = vld [vmem:[%s3 + $0x134] sm:$0xf]
  %v401 = vld [vmem:[%s3 + $0x138] sm:$0xff]
  %v402 = vld [vmem:[%s3 + $0x140] sm:$0xf]
  %v403 = vld [vmem:[%s3 + $0x144] sm:$0xff]
  %v404 = vld [vmem:[%s3 + $0x14c] sm:$0xf]
  %v405 = vld [vmem:[%s3 + $0x150] sm:$0xff]
  %v406 = vld [vmem:[%s3 + $0x158] sm:$0xf]
  %v407 = vld [vmem:[%s3 + $0x15c] sm:$0xff]
  %v408 = vld [vmem:[%s3 + $0x164] sm:$0xf]
  %v409 = vld [vmem:[%s3 + $0x168] sm:$0xff]
  %v410 = vld [vmem:[%s3 + $0x170] sm:$0xf]
  %v411 = vld [vmem:[%s3 + $0x174] sm:$0xff]
  %v412 = vld [vmem:[%s3 + $0x17c] sm:$0xf]
  %v413 = vld [vmem:[%s3 + $0x180] sm:$0xff]
  %v414 = vld [vmem:[%s3 + $0x188] sm:$0xf]
  %v415 = vld [vmem:[%s3 + $0x18c] sm:$0xff]
  %v416 = vld [vmem:[%s3 + $0x194] sm:$0xf]
  %v417 = vld [vmem:[%s3 + $0x198] sm:$0xff]
  %v418 = vld [vmem:[%s3 + $0x1a0] sm:$0xf]
  %v419 = vld [vmem:[%s3 + $0x1a4] sm:$0xff]
  %v420 = vld [vmem:[%s3 + $0x1ac] sm:$0xf]
  %v421 = vld [vmem:[%s3 + $0x1b0] sm:$0xff]
  %v422 = vld [vmem:[%s3 + $0x1b8] sm:$0xf]
  %v423 = vld [vmem:[%s3 + $0x1bc] sm:$0xff]
  %v424 = vld [vmem:[%s3 + $0x1c4] sm:$0xf]
  %v425 = vld [vmem:[%s3 + $0x1c8] sm:$0xff]
  %v426 = vld [vmem:[%s3 + $0x1d0] sm:$0xf]
  %v427 = vld [vmem:[%s3 + $0x1d4] sm:$0xff]
  %v428 = vld [vmem:[%s3 + $0x1dc] sm:$0xf]
  %v429 = vld [vmem:[%s3 + $0x1e0] sm:$0xff]
  %v430 = vld [vmem:[%s3 + $0x1e8] sm:$0xf]
  %v431 = vld [vmem:[%s3 + $0x1ec] sm:$0xff]
  %v432 = vld [vmem:[%s3 + $0x1f4] sm:$0xf]
  %v433 = vld [vmem:[%s3 + $0x1f8] sm:$0xff]
  %v434 = vld [vmem:[%s3 + $0x200] sm:$0xf]
  %v435 = vld [vmem:[%s3 + $0x204] sm:$0xff]
  %v436 = vld [vmem:[%s3 + $0x20c] sm:$0xf]
  %v437 = vld [vmem:[%s3 + $0x210] sm:$0xff]
  %v438 = vld [vmem:[%s3 + $0x218] sm:$0xf]
  %v439 = vld [vmem:[%s3 + $0x21c] sm:$0xff]
  %v440 = vld [vmem:[%s3 + $0x224] sm:$0xf]
  %v441 = vld [vmem:[%s3 + $0x228] sm:$0xff]
  %v442 = vld [vmem:[%s3 + $0x230] sm:$0xf]
  %v443 = vld [vmem:[%s3 + $0x234] sm:$0xff]
  %v444 = vld [vmem:[%s3 + $0x23c] sm:$0xf]
  %v445 = vld [vmem:[%s4] sm:$0x7]
  %v447 = vperm.slane %v445, 0
  %v448 = vperm.slane %v445, 1
  %v449 = vperm.slane %v445, 2
  %v549 = vunpack.c.l.b16 %v349
  %v550 = vunpack.c.h.b16 %v349
  %v551 = vunpack.c.l.b16 %v350
  %v552 = vunpack.c.l.b16 %v351
  %v553 = vunpack.c.h.b16 %v351
  %v554 = vunpack.c.l.b16 %v352
  %v555 = vunpack.c.l.b16 %v353
  %v556 = vunpack.c.h.b16 %v353
  %v557 = vunpack.c.l.b16 %v354
  %v558 = vunpack.c.l.b16 %v355
  %v559 = vunpack.c.h.b16 %v355
  %v560 = vunpack.c.l.b16 %v356
  %v561 = vunpack.c.l.b16 %v357
  %v562 = vunpack.c.h.b16 %v357
  %v563 = vunpack.c.l.b16 %v358
  %v564 = vunpack.c.l.b16 %v359
  %v565 = vunpack.c.h.b16 %v359
  %v566 = vunpack.c.l.b16 %v360
  %v567 = vunpack.c.l.b16 %v361
  %v568 = vunpack.c.h.b16 %v361
  %v569 = vunpack.c.l.b16 %v362
  %v570 = vunpack.c.l.b16 %v363
  %v571 = vunpack.c.h.b16 %v363
  %v572 = vunpack.c.l.b16 %v364
  %v573 = vunpack.c.l.b16 %v365
  %v574 = vunpack.c.h.b16 %v365
  %v575 = vunpack.c.l.b16 %v366
  %v576 = vunpack.c.l.b16 %v367
  %v577 = vunpack.c.h.b16 %v367
  %v578 = vunpack.c.l.b16 %v368
  %v579 = vunpack.c.l.b16 %v369
  %v580 = vunpack.c.h.b16 %v369
  %v581 = vunpack.c.l.b16 %v370
  %v582 = vunpack.c.l.b16 %v371
  %v583 = vunpack.c.h.b16 %v371
  %v584 = vunpack.c.l.b16 %v372
  %v585 = vunpack.c.l.b16 %v373
  %v586 = vunpack.c.h.b16 %v373
  %v587 = vunpack.c.l.b16 %v374
  %v588 = vunpack.c.l.b16 %v375
  %v589 = vunpack.c.h.b16 %v375
  %v590 = vunpack.c.l.b16 %v376
  %v591 = vunpack.c.l.b16 %v377
  %v592 = vunpack.c.h.b16 %v377
  %v593 = vunpack.c.l.b16 %v378
  %v594 = vunpack.c.l.b16 %v379
  %v595 = vunpack.c.h.b16 %v379
  %v596 = vunpack.c.l.b16 %v380
  %v597 = vunpack.c.l.b16 %v381
  %v598 = vunpack.c.h.b16 %v381
  %v599 = vunpack.c.l.b16 %v382
  %v600 = vunpack.c.l.b16 %v383
  %v601 = vunpack.c.h.b16 %v383
  %v602 = vunpack.c.l.b16 %v384
  %v603 = vunpack.c.l.b16 %v385
  %v604 = vunpack.c.h.b16 %v385
  %v605 = vunpack.c.l.b16 %v386
  %v606 = vunpack.c.l.b16 %v387
  %v607 = vunpack.c.h.b16 %v387
  %v608 = vunpack.c.l.b16 %v388
  %v609 = vunpack.c.l.b16 %v389
  %v610 = vunpack.c.h.b16 %v389
  %v611 = vunpack.c.l.b16 %v390
  %v612 = vunpack.c.l.b16 %v391
  %v613 = vunpack.c.h.b16 %v391
  %v614 = vunpack.c.l.b16 %v392
  %v615 = vunpack.c.l.b16 %v393
  %v616 = vunpack.c.h.b16 %v393
  %v617 = vunpack.c.l.b16 %v394
  %v618 = vunpack.c.l.b16 %v395
  %v619 = vunpack.c.h.b16 %v395
  %v620 = vunpack.c.l.b16 %v396
  %v621 = vunpack.c.l.b16 %v397
  %v622 = vunpack.c.h.b16 %v397
  %v623 = vunpack.c.l.b16 %v398
  %v624 = vunpack.c.l.b16 %v399
  %v625 = vunpack.c.h.b16 %v399
  %v626 = vunpack.c.l.b16 %v400
  %v627 = vunpack.c.l.b16 %v401
  %v628 = vunpack.c.h.b16 %v401
  %v629 = vunpack.c.l.b16 %v402
  %v630 = vunpack.c.l.b16 %v403
  %v631 = vunpack.c.h.b16 %v403
  %v632 = vunpack.c.l.b16 %v404
  %v633 = vunpack.c.l.b16 %v405
  %v634 = vunpack.c.h.b16 %v405
  %v635 = vunpack.c.l.b16 %v406
  %v636 = vunpack.c.l.b16 %v407
  %v637 = vunpack.c.h.b16 %v407
  %v638 = vunpack.c.l.b16 %v408
  %v639 = vunpack.c.l.b16 %v409
  %v640 = vunpack.c.h.b16 %v409
  %v641 = vunpack.c.l.b16 %v410
  %v642 = vunpack.c.l.b16 %v411
  %v643 = vunpack.c.h.b16 %v411
  %v644 = vunpack.c.l.b16 %v412
  %v645 = vunpack.c.l.b16 %v413
  %v646 = vunpack.c.h.b16 %v413
  %v647 = vunpack.c.l.b16 %v414
  %v648 = vunpack.c.l.b16 %v415
  %v649 = vunpack.c.h.b16 %v415
  %v650 = vunpack.c.l.b16 %v416
  %v651 = vunpack.c.l.b16 %v417
  %v652 = vunpack.c.h.b16 %v417
  %v653 = vunpack.c.l.b16 %v418
  %v654 = vunpack.c.l.b16 %v419
  %v655 = vunpack.c.h.b16 %v419
  %v656 = vunpack.c.l.b16 %v420
  %v657 = vunpack.c.l.b16 %v421
  %v658 = vunpack.c.h.b16 %v421
  %v659 = vunpack.c.l.b16 %v422
  %v660 = vunpack.c.l.b16 %v423
  %v661 = vunpack.c.h.b16 %v423
  %v662 = vunpack.c.l.b16 %v424
  %v663 = vunpack.c.l.b16 %v425
  %v664 = vunpack.c.h.b16 %v425
  %v665 = vunpack.c.l.b16 %v426
  %v666 = vunpack.c.l.b16 %v427
  %v667 = vunpack.c.h.b16 %v427
  %v668 = vunpack.c.l.b16 %v428
  %v669 = vunpack.c.l.b16 %v429
  %v670 = vunpack.c.h.b16 %v429
  %v671 = vunpack.c.l.b16 %v430
  %v672 = vunpack.c.l.b16 %v431
  %v673 = vunpack.c.h.b16 %v431
  %v674 = vunpack.c.l.b16 %v432
  %v675 = vunpack.c.l.b16 %v433
  %v676 = vunpack.c.h.b16 %v433
  %v677 = vunpack.c.l.b16 %v434
  %v678 = vunpack.c.l.b16 %v435
  %v679 = vunpack.c.h.b16 %v435
  %v680 = vunpack.c.l.b16 %v436
  %v681 = vunpack.c.l.b16 %v437
  %v682 = vunpack.c.h.b16 %v437
  %v683 = vunpack.c.l.b16 %v438
  %v684 = vunpack.c.l.b16 %v439
  %v685 = vunpack.c.h.b16 %v439
  %v686 = vunpack.c.l.b16 %v440
  %v687 = vunpack.c.l.b16 %v441
  %v688 = vunpack.c.h.b16 %v441
  %v689 = vunpack.c.l.b16 %v442
  %v690 = vunpack.c.l.b16 %v443
  %v691 = vunpack.c.h.b16 %v443
  %v692 = vunpack.c.l.b16 %v444
  %v693 = vpack.c.b16 %v552, %v549
  %v694 = vpack.c.b16 %v553, %v550
  %v695 = vpack.c.b16 %v554, %v551
  %v696 = vpack.c.b16 %v558, %v555
  %v697 = vpack.c.b16 %v559, %v556
  %v698 = vpack.c.b16 %v560, %v557
  %v699 = vpack.c.b16 %v564, %v561
  %v700 = vpack.c.b16 %v565, %v562
  %v701 = vpack.c.b16 %v566, %v563
  %v702 = vpack.c.b16 %v570, %v567
  %v703 = vpack.c.b16 %v571, %v568
  %v704 = vpack.c.b16 %v572, %v569
  %v705 = vpack.c.b16 %v576, %v573
  %v706 = vpack.c.b16 %v577, %v574
  %v707 = vpack.c.b16 %v578, %v575
  %v708 = vpack.c.b16 %v582, %v579
  %v709 = vpack.c.b16 %v583, %v580
  %v710 = vpack.c.b16 %v584, %v581
  %v711 = vpack.c.b16 %v588, %v585
  %v712 = vpack.c.b16 %v589, %v586
  %v713 = vpack.c.b16 %v590, %v587
  %v714 = vpack.c.b16 %v594, %v591
  %v715 = vpack.c.b16 %v595, %v592
  %v716 = vpack.c.b16 %v596, %v593
  %v717 = vpack.c.b16 %v600, %v597
  %v718 = vpack.c.b16 %v601, %v598
  %v719 = vpack.c.b16 %v602, %v599
  %v720 = vpack.c.b16 %v606, %v603
  %v721 = vpack.c.b16 %v607, %v604
  %v722 = vpack.c.b16 %v608, %v605
  %v723 = vpack.c.b16 %v612, %v609
  %v724 = vpack.c.b16 %v613, %v610
  %v725 = vpack.c.b16 %v614, %v611
  %v726 = vpack.c.b16 %v618, %v615
  %v727 = vpack.c.b16 %v619, %v616
  %v728 = vpack.c.b16 %v620, %v617
  %v729 = vpack.c.b16 %v624, %v621
  %v730 = vpack.c.b16 %v625, %v622
  %v731 = vpack.c.b16 %v626, %v623
  %v732 = vpack.c.b16 %v630, %v627
  %v733 = vpack.c.b16 %v631, %v628
  %v734 = vpack.c.b16 %v632, %v629
  %v735 = vpack.c.b16 %v636, %v633
  %v736 = vpack.c.b16 %v637, %v634
  %v737 = vpack.c.b16 %v638, %v635
  %v738 = vpack.c.b16 %v642, %v639
  %v739 = vpack.c.b16 %v643, %v640
  %v740 = vpack.c.b16 %v644, %v641
  %v741 = vpack.c.b16 %v648, %v645
  %v742 = vpack.c.b16 %v649, %v646
  %v743 = vpack.c.b16 %v650, %v647
  %v744 = vpack.c.b16 %v654, %v651
  %v745 = vpack.c.b16 %v655, %v652
  %v746 = vpack.c.b16 %v656, %v653
  %v747 = vpack.c.b16 %v660, %v657
  %v748 = vpack.c.b16 %v661, %v658
  %v749 = vpack.c.b16 %v662, %v659
  %v750 = vpack.c.b16 %v666, %v663
  %v751 = vpack.c.b16 %v667, %v664
  %v752 = vpack.c.b16 %v668, %v665
  %v753 = vpack.c.b16 %v672, %v669
  %v754 = vpack.c.b16 %v673, %v670
  %v755 = vpack.c.b16 %v674, %v671
  %v756 = vpack.c.b16 %v678, %v675
  %v757 = vpack.c.b16 %v679, %v676
  %v758 = vpack.c.b16 %v680, %v677
  %v759 = vpack.c.b16 %v684, %v681
  %v760 = vpack.c.b16 %v685, %v682
  %v761 = vpack.c.b16 %v686, %v683
  %v762 = vpack.c.b16 %v690, %v687
  %v763 = vpack.c.b16 %v691, %v688
  %v764 = vpack.c.b16 %v692, %v689
  %837 = vmatpush.bf16.msra.mxu0 %v714
  %838 = vmatpush.bf16.msra.mxu0 %v711
  %839 = vmatpush.bf16.msra.mxu0 %v708
  %840 = vmatpush.bf16.msra.mxu0 %v705
  %841 = vmatpush.bf16.msra.mxu0 %v702
  %842 = vmatpush.bf16.msra.mxu0 %v699
  %843 = vmatpush.bf16.msra.mxu0 %v696
  %844 = vmatpush.bf16.msra.mxu0 %v693
  %845 = vmatmul.bf16.gmra.mxu0 %v325
  %v846 = vpop.f32.mrf.mxu0
  %v847 = vadd.f32 %v447, %v846
  %v848 = vpop.f32.mrf.mxu0
  %v849 = vadd.f32 %v447, %v848
  %850 = vmatmul.bf16.gmra.mxu0 %v328
  %v851 = vpop.f32.mrf.mxu0
  %v852 = vadd.f32 %v447, %v851
  %v853 = vpop.f32.mrf.mxu0
  %v854 = vadd.f32 %v447, %v853
  %855 = vmatmul.bf16.gmra.mxu0 %v331
  %v856 = vpop.f32.mrf.mxu0
  %v857 = vadd.f32 %v447, %v856
  %v858 = vpop.f32.mrf.mxu0
  %v859 = vadd.f32 %v447, %v858
  %860 = vmatmul.bf16.gmra.mxu0 %v334
  %v861 = vpop.f32.mrf.mxu0
  %v862 = vadd.f32 %v447, %v861
  %v863 = vpop.f32.mrf.mxu0
  %v864 = vadd.f32 %v447, %v863
  %865 = vmatmul.bf16.gmra.mxu0 %v337
  %v866 = vpop.f32.mrf.mxu0
  %v867 = vadd.f32 %v447, %v866
  %v868 = vpop.f32.mrf.mxu0
  %v869 = vadd.f32 %v447, %v868
  %870 = vmatmul.bf16.gmra.mxu0 %v340
  %v871 = vpop.f32.mrf.mxu0
  %v872 = vadd.f32 %v447, %v871
  %v873 = vpop.f32.mrf.mxu0
  %v874 = vadd.f32 %v447, %v873
  %875 = vmatmul.bf16.gmra.mxu0 %v343
  %v876 = vpop.f32.mrf.mxu0
  %v877 = vadd.f32 %v447, %v876
  %v878 = vpop.f32.mrf.mxu0
  %v879 = vadd.f32 %v447, %v878
  %880 = vmatmul.bf16.gmra.mxu0 %v346
  %v881 = vpop.f32.mrf.mxu0
  %v882 = vadd.f32 %v447, %v881
  %v883 = vpop.f32.mrf.mxu0
  %v884 = vadd.f32 %v447, %v883
  %885 = vdwg.mxu0
  %886 = vmatpush.bf16.msra.mxu0 %v738
  %887 = vmatpush.bf16.msra.mxu0 %v735
  %888 = vmatpush.bf16.msra.mxu0 %v732
  %889 = vmatpush.bf16.msra.mxu0 %v729
  %890 = vmatpush.bf16.msra.mxu0 %v726
  %891 = vmatpush.bf16.msra.mxu0 %v723
  %892 = vmatpush.bf16.msra.mxu0 %v720
  %893 = vmatpush.bf16.msra.mxu0 %v717
  %894 = vmatmul.bf16.gmra.mxu0 %v326
  %v895 = vpop.f32.mrf.mxu0
  %v896 = vadd.f32 %v847, %v895
  %v897 = vpop.f32.mrf.mxu0
  %v898 = vadd.f32 %v849, %v897
  %899 = vmatmul.bf16.gmra.mxu0 %v329
  %v900 = vpop.f32.mrf.mxu0
  %v901 = vadd.f32 %v852, %v900
  %v902 = vpop.f32.mrf.mxu0
  %v903 = vadd.f32 %v854, %v902
  %904 = vmatmul.bf16.gmra.mxu0 %v332
  %v905 = vpop.f32.mrf.mxu0
  %v906 = vadd.f32 %v857, %v905
  %v907 = vpop.f32.mrf.mxu0
  %v908 = vadd.f32 %v859, %v907
  %909 = vmatmul.bf16.gmra.mxu0 %v335
  %v910 = vpop.f32.mrf.mxu0
  %v911 = vadd.f32 %v862, %v910
  %v912 = vpop.f32.mrf.mxu0
  %v913 = vadd.f32 %v864, %v912
  %914 = vmatmul.bf16.gmra.mxu0 %v338
  %v915 = vpop.f32.mrf.mxu0
  %v916 = vadd.f32 %v867, %v915
  %v917 = vpop.f32.mrf.mxu0
  %v918 = vadd.f32 %v869, %v917
  %919 = vmatmul.bf16.gmra.mxu0 %v341
  %v920 = vpop.f32.mrf.mxu0
  %v921 = vadd.f32 %v872, %v920
  %v922 = vpop.f32.mrf.mxu0
  %v923 = vadd.f32 %v874, %v922
  %924 = vmatmul.bf16.gmra.mxu0 %v344
  %v925 = vpop.f32.mrf.mxu0
  %v926 = vadd.f32 %v877, %v925
  %v927 = vpop.f32.mrf.mxu0
  %v928 = vadd.f32 %v879, %v927
  %929 = vmatmul.bf16.gmra.mxu0 %v347
  %v930 = vpop.f32.mrf.mxu0
  %v931 = vadd.f32 %v882, %v930
  %v932 = vpop.f32.mrf.mxu0
  %v933 = vadd.f32 %v884, %v932
  %934 = vdwg.mxu0
  %935 = vmatpush.bf16.msra.mxu0 %v762
  %936 = vmatpush.bf16.msra.mxu0 %v759
  %937 = vmatpush.bf16.msra.mxu0 %v756
  %938 = vmatpush.bf16.msra.mxu0 %v753
  %939 = vmatpush.bf16.msra.mxu0 %v750
  %940 = vmatpush.bf16.msra.mxu0 %v747
  %941 = vmatpush.bf16.msra.mxu0 %v744
  %942 = vmatpush.bf16.msra.mxu0 %v741
  %943 = vmatmul.bf16.gmra.mxu0 %v327
  %v944 = vpop.f32.mrf.mxu0
  %v945 = vadd.f32 %v896, %v944
  %v946 = vpop.f32.mrf.mxu0
  %v947 = vadd.f32 %v898, %v946
  %948 = vmatmul.bf16.gmra.mxu0 %v330
  %v949 = vpop.f32.mrf.mxu0
  %v950 = vadd.f32 %v901, %v949
  %v951 = vpop.f32.mrf.mxu0
  %v952 = vadd.f32 %v903, %v951
  %953 = vmatmul.bf16.gmra.mxu0 %v333
  %v954 = vpop.f32.mrf.mxu0
  %v955 = vadd.f32 %v906, %v954
  %v956 = vpop.f32.mrf.mxu0
  %v957 = vadd.f32 %v908, %v956
  %958 = vmatmul.bf16.gmra.mxu0 %v336
  %v959 = vpop.f32.mrf.mxu0
  %v960 = vadd.f32 %v911, %v959
  %v961 = vpop.f32.mrf.mxu0
  %v962 = vadd.f32 %v913, %v961
  %963 = vmatmul.bf16.gmra.mxu0 %v339
  %v964 = vpop.f32.mrf.mxu0
  %v965 = vadd.f32 %v916, %v964
  %v966 = vpop.f32.mrf.mxu0
  %v967 = vadd.f32 %v918, %v966
  %968 = vmatmul.bf16.gmra.mxu0 %v342
  %v969 = vpop.f32.mrf.mxu0
  %v970 = vadd.f32 %v921, %v969
  %v971 = vpop.f32.mrf.mxu0
  %v972 = vadd.f32 %v923, %v971
  %973 = vmatmul.bf16.gmra.mxu0 %v345
  %v974 = vpop.f32.mrf.mxu0
  %v975 = vadd.f32 %v926, %v974
  %v976 = vpop.f32.mrf.mxu0
  %v977 = vadd.f32 %v928, %v976
  %978 = vmatmul.bf16.gmra.mxu0 %v348
  %v979 = vpop.f32.mrf.mxu0
  %v980 = vadd.f32 %v931, %v979
  %v981 = vpop.f32.mrf.mxu0
  %v982 = vadd.f32 %v933, %v981
  %983 = vdwg.mxu0
  %984 = vmatpush.bf16.msra.mxu0 %v715
  %985 = vmatpush.bf16.msra.mxu0 %v712
  %986 = vmatpush.bf16.msra.mxu0 %v709
  %987 = vmatpush.bf16.msra.mxu0 %v706
  %988 = vmatpush.bf16.msra.mxu0 %v703
  %989 = vmatpush.bf16.msra.mxu0 %v700
  %990 = vmatpush.bf16.msra.mxu0 %v697
  %991 = vmatpush.bf16.msra.mxu0 %v694
  %992 = vmatmul.bf16.gmra.mxu0 %v325
  %v993 = vpop.f32.mrf.mxu0
  %v994 = vadd.f32 %v448, %v993
  %v995 = vpop.f32.mrf.mxu0
  %v996 = vadd.f32 %v448, %v995
  %997 = vmatmul.bf16.gmra.mxu0 %v328
  %v998 = vpop.f32.mrf.mxu0
  %v999 = vadd.f32 %v448, %v998
  %v1000 = vpop.f32.mrf.mxu0
  %v1001 = vadd.f32 %v448, %v1000
  %1002 = vmatmul.bf16.gmra.mxu0 %v331
  %v1003 = vpop.f32.mrf.mxu0
  %v1004 = vadd.f32 %v448, %v1003
  %v1005 = vpop.f32.mrf.mxu0
  %v1006 = vadd.f32 %v448, %v1005
  %1007 = vmatmul.bf16.gmra.mxu0 %v334
  %v1008 = vpop.f32.mrf.mxu0
  %v1009 = vadd.f32 %v448, %v1008
  %v1010 = vpop.f32.mrf.mxu0
  %v1011 = vadd.f32 %v448, %v1010
  %1012 = vmatmul.bf16.gmra.mxu0 %v337
  %v1013 = vpop.f32.mrf.mxu0
  %v1014 = vadd.f32 %v448, %v1013
  %v1015 = vpop.f32.mrf.mxu0
  %v1016 = vadd.f32 %v448, %v1015
  %1017 = vmatmul.bf16.gmra.mxu0 %v340
  %v1018 = vpop.f32.mrf.mxu0
  %v1019 = vadd.f32 %v448, %v1018
  %v1020 = vpop.f32.mrf.mxu0
  %v1021 = vadd.f32 %v448, %v1020
  %1022 = vmatmul.bf16.gmra.mxu0 %v343
  %v1023 = vpop.f32.mrf.mxu0
  %v1024 = vadd.f32 %v448, %v1023
  %v1025 = vpop.f32.mrf.mxu0
  %v1026 = vadd.f32 %v448, %v1025
  %1027 = vmatmul.bf16.gmra.mxu0 %v346
  %v1028 = vpop.f32.mrf.mxu0
  %v1029 = vadd.f32 %v448, %v1028
  %v1030 = vpop.f32.mrf.mxu0
  %v1031 = vadd.f32 %v448, %v1030
  %1032 = vdwg.mxu0
  %1033 = vmatpush.bf16.msra.mxu0 %v739
  %1034 = vmatpush.bf16.msra.mxu0 %v736
  %1035 = vmatpush.bf16.msra.mxu0 %v733
  %1036 = vmatpush.bf16.msra.mxu0 %v730
  %1037 = vmatpush.bf16.msra.mxu0 %v727
  %1038 = vmatpush.bf16.msra.mxu0 %v724
  %1039 = vmatpush.bf16.msra.mxu0 %v721
  %1040 = vmatpush.bf16.msra.mxu0 %v718
  %1041 = vmatmul.bf16.gmra.mxu0 %v326
  %v1042 = vpop.f32.mrf.mxu0
  %v1043 = vadd.f32 %v994, %v1042
  %v1044 = vpop.f32.mrf.mxu0
  %v1045 = vadd.f32 %v996, %v1044
  %1046 = vmatmul.bf16.gmra.mxu0 %v329
  %v1047 = vpop.f32.mrf.mxu0
  %v1048 = vadd.f32 %v999, %v1047
  %v1049 = vpop.f32.mrf.mxu0
  %v1050 = vadd.f32 %v1001, %v1049
  %1051 = vmatmul.bf16.gmra.mxu0 %v332
  %v1052 = vpop.f32.mrf.mxu0
  %v1053 = vadd.f32 %v1004, %v1052
  %v1054 = vpop.f32.mrf.mxu0
  %v1055 = vadd.f32 %v1006, %v1054
  %1056 = vmatmul.bf16.gmra.mxu0 %v335
  %v1057 = vpop.f32.mrf.mxu0
  %v1058 = vadd.f32 %v1009, %v1057
  %v1059 = vpop.f32.mrf.mxu0
  %v1060 = vadd.f32 %v1011, %v1059
  %1061 = vmatmul.bf16.gmra.mxu0 %v338
  %v1062 = vpop.f32.mrf.mxu0
  %v1063 = vadd.f32 %v1014, %v1062
  %v1064 = vpop.f32.mrf.mxu0
  %v1065 = vadd.f32 %v1016, %v1064
  %1066 = vmatmul.bf16.gmra.mxu0 %v341
  %v1067 = vpop.f32.mrf.mxu0
  %v1068 = vadd.f32 %v1019, %v1067
  %v1069 = vpop.f32.mrf.mxu0
  %v1070 = vadd.f32 %v1021, %v1069
  %1071 = vmatmul.bf16.gmra.mxu0 %v344
  %v1072 = vpop.f32.mrf.mxu0
  %v1073 = vadd.f32 %v1024, %v1072
  %v1074 = vpop.f32.mrf.mxu0
  %v1075 = vadd.f32 %v1026, %v1074
  %1076 = vmatmul.bf16.gmra.mxu0 %v347
  %v1077 = vpop.f32.mrf.mxu0
  %v1078 = vadd.f32 %v1029, %v1077
  %v1079 = vpop.f32.mrf.mxu0
  %v1080 = vadd.f32 %v1031, %v1079
  %1081 = vdwg.mxu0
  %1082 = vmatpush.bf16.msra.mxu0 %v763
  %1083 = vmatpush.bf16.msra.mxu0 %v760
  %1084 = vmatpush.bf16.msra.mxu0 %v757
  %1085 = vmatpush.bf16.msra.mxu0 %v754
  %1086 = vmatpush.bf16.msra.mxu0 %v751
  %1087 = vmatpush.bf16.msra.mxu0 %v748
  %1088 = vmatpush.bf16.msra.mxu0 %v745
  %1089 = vmatpush.bf16.msra.mxu0 %v742
  %1090 = vmatmul.bf16.gmra.mxu0 %v327
  %v1091 = vpop.f32.mrf.mxu0
  %v1092 = vadd.f32 %v1043, %v1091
  %v1093 = vpop.f32.mrf.mxu0
  %v1094 = vadd.f32 %v1045, %v1093
  %1095 = vmatmul.bf16.gmra.mxu0 %v330
  %v1096 = vpop.f32.mrf.mxu0
  %v1097 = vadd.f32 %v1048, %v1096
  %v1098 = vpop.f32.mrf.mxu0
  %v1099 = vadd.f32 %v1050, %v1098
  %1100 = vmatmul.bf16.gmra.mxu0 %v333
  %v1101 = vpop.f32.mrf.mxu0
  %v1102 = vadd.f32 %v1053, %v1101
  %v1103 = vpop.f32.mrf.mxu0
  %v1104 = vadd.f32 %v1055, %v1103
  %1105 = vmatmul.bf16.gmra.mxu0 %v336
  %v1106 = vpop.f32.mrf.mxu0
  %v1107 = vadd.f32 %v1058, %v1106
  %v1108 = vpop.f32.mrf.mxu0
  %v1109 = vadd.f32 %v1060, %v1108
  %1110 = vmatmul.bf16.gmra.mxu0 %v339
  %v1111 = vpop.f32.mrf.mxu0
  %v1112 = vadd.f32 %v1063, %v1111
  %v1113 = vpop.f32.mrf.mxu0
  %v1114 = vadd.f32 %v1065, %v1113
  %1115 = vmatmul.bf16.gmra.mxu0 %v342
  %v1116 = vpop.f32.mrf.mxu0
  %v1117 = vadd.f32 %v1068, %v1116
  %v1118 = vpop.f32.mrf.mxu0
  %v1119 = vadd.f32 %v1070, %v1118
  %1120 = vmatmul.bf16.gmra.mxu0 %v345
  %v1121 = vpop.f32.mrf.mxu0
  %v1122 = vadd.f32 %v1073, %v1121
  %v1123 = vpop.f32.mrf.mxu0
  %v1124 = vadd.f32 %v1075, %v1123
  %1125 = vmatmul.bf16.gmra.mxu0 %v348
  %v1126 = vpop.f32.mrf.mxu0
  %v1127 = vadd.f32 %v1078, %v1126
  %v1128 = vpop.f32.mrf.mxu0
  %v1129 = vadd.f32 %v1080, %v1128
  %1130 = vdwg.mxu0
  %1131 = vmatpush.bf16.msra.mxu0 %v716
  %1132 = vmatpush.bf16.msra.mxu0 %v713
  %1133 = vmatpush.bf16.msra.mxu0 %v710
  %1134 = vmatpush.bf16.msra.mxu0 %v707
  %1135 = vmatpush.bf16.msra.mxu0 %v704
  %1136 = vmatpush.bf16.msra.mxu0 %v701
  %1137 = vmatpush.bf16.msra.mxu0 %v698
  %1138 = vmatpush.bf16.msra.mxu0 %v695
  %1139 = vmatmul.bf16.gmra.mxu0 %v325
  %v1140 = vpop.f32.mrf.mxu0
  %v1141 = vadd.f32 %v449, %v1140
  %v1142 = vpop.f32.mrf.mxu0
  %v1143 = vadd.f32 %v449, %v1142
  %1144 = vmatmul.bf16.gmra.mxu0 %v328
  %v1145 = vpop.f32.mrf.mxu0
  %v1146 = vadd.f32 %v449, %v1145
  %v1147 = vpop.f32.mrf.mxu0
  %v1148 = vadd.f32 %v449, %v1147
  %1149 = vmatmul.bf16.gmra.mxu0 %v331
  %v1150 = vpop.f32.mrf.mxu0
  %v1151 = vadd.f32 %v449, %v1150
  %v1152 = vpop.f32.mrf.mxu0
  %v1153 = vadd.f32 %v449, %v1152
  %1154 = vmatmul.bf16.gmra.mxu0 %v334
  %v1155 = vpop.f32.mrf.mxu0
  %v1156 = vadd.f32 %v449, %v1155
  %v1157 = vpop.f32.mrf.mxu0
  %v1158 = vadd.f32 %v449, %v1157
  %1159 = vmatmul.bf16.gmra.mxu0 %v337
  %v1160 = vpop.f32.mrf.mxu0
  %v1161 = vadd.f32 %v449, %v1160
  %v1162 = vpop.f32.mrf.mxu0
  %v1163 = vadd.f32 %v449, %v1162
  %1164 = vmatmul.bf16.gmra.mxu0 %v340
  %v1165 = vpop.f32.mrf.mxu0
  %v1166 = vadd.f32 %v449, %v1165
  %v1167 = vpop.f32.mrf.mxu0
  %v1168 = vadd.f32 %v449, %v1167
  %1169 = vmatmul.bf16.gmra.mxu0 %v343
  %v1170 = vpop.f32.mrf.mxu0
  %v1171 = vadd.f32 %v449, %v1170
  %v1172 = vpop.f32.mrf.mxu0
  %v1173 = vadd.f32 %v449, %v1172
  %1174 = vmatmul.bf16.gmra.mxu0 %v346
  %v1175 = vpop.f32.mrf.mxu0
  %v1176 = vadd.f32 %v449, %v1175
  %v1177 = vpop.f32.mrf.mxu0
  %v1178 = vadd.f32 %v449, %v1177
  %1179 = vdwg.mxu0
  %1180 = vmatpush.bf16.msra.mxu0 %v740
  %1181 = vmatpush.bf16.msra.mxu0 %v737
  %1182 = vmatpush.bf16.msra.mxu0 %v734
  %1183 = vmatpush.bf16.msra.mxu0 %v731
  %1184 = vmatpush.bf16.msra.mxu0 %v728
  %1185 = vmatpush.bf16.msra.mxu0 %v725
  %1186 = vmatpush.bf16.msra.mxu0 %v722
  %1187 = vmatpush.bf16.msra.mxu0 %v719
  %1188 = vmatmul.bf16.gmra.mxu0 %v326
  %v1189 = vpop.f32.mrf.mxu0
  %v1190 = vadd.f32 %v1141, %v1189
  %v1191 = vpop.f32.mrf.mxu0
  %v1192 = vadd.f32 %v1143, %v1191
  %1193 = vmatmul.bf16.gmra.mxu0 %v329
  %v1194 = vpop.f32.mrf.mxu0
  %v1195 = vadd.f32 %v1146, %v1194
  %v1196 = vpop.f32.mrf.mxu0
  %v1197 = vadd.f32 %v1148, %v1196
  %1198 = vmatmul.bf16.gmra.mxu0 %v332
  %v1199 = vpop.f32.mrf.mxu0
  %v1200 = vadd.f32 %v1151, %v1199
  %v1201 = vpop.f32.mrf.mxu0
  %v1202 = vadd.f32 %v1153, %v1201
  %1203 = vmatmul.bf16.gmra.mxu0 %v335
  %v1204 = vpop.f32.mrf.mxu0
  %v1205 = vadd.f32 %v1156, %v1204
  %v1206 = vpop.f32.mrf.mxu0
  %v1207 = vadd.f32 %v1158, %v1206
  %1208 = vmatmul.bf16.gmra.mxu0 %v338
  %v1209 = vpop.f32.mrf.mxu0
  %v1210 = vadd.f32 %v1161, %v1209
  %v1211 = vpop.f32.mrf.mxu0
  %v1212 = vadd.f32 %v1163, %v1211
  %1213 = vmatmul.bf16.gmra.mxu0 %v341
  %v1214 = vpop.f32.mrf.mxu0
  %v1215 = vadd.f32 %v1166, %v1214
  %v1216 = vpop.f32.mrf.mxu0
  %v1217 = vadd.f32 %v1168, %v1216
  %1218 = vmatmul.bf16.gmra.mxu0 %v344
  %v1219 = vpop.f32.mrf.mxu0
  %v1220 = vadd.f32 %v1171, %v1219
  %v1221 = vpop.f32.mrf.mxu0
  %v1222 = vadd.f32 %v1173, %v1221
  %1223 = vmatmul.bf16.gmra.mxu0 %v347
  %v1224 = vpop.f32.mrf.mxu0
  %v1225 = vadd.f32 %v1176, %v1224
  %v1226 = vpop.f32.mrf.mxu0
  %v1227 = vadd.f32 %v1178, %v1226
  %1228 = vdwg.mxu0
  %1229 = vmatpush.bf16.msra.mxu0 %v764
  %1230 = vmatpush.bf16.msra.mxu0 %v761
  %1231 = vmatpush.bf16.msra.mxu0 %v758
  %1232 = vmatpush.bf16.msra.mxu0 %v755
  %1233 = vmatpush.bf16.msra.mxu0 %v752
  %1234 = vmatpush.bf16.msra.mxu0 %v749
  %1235 = vmatpush.bf16.msra.mxu0 %v746
  %1236 = vmatpush.bf16.msra.mxu0 %v743
  %1237 = vmatmul.bf16.gmra.mxu0 %v327
  %v1238 = vpop.f32.mrf.mxu0
  %v1239 = vadd.f32 %v1190, %v1238
  %v1240 = vpop.f32.mrf.mxu0
  %v1241 = vadd.f32 %v1192, %v1240
  %1242 = vmatmul.bf16.gmra.mxu0 %v330
  %v1243 = vpop.f32.mrf.mxu0
  %v1244 = vadd.f32 %v1195, %v1243
  %v1245 = vpop.f32.mrf.mxu0
  %v1246 = vadd.f32 %v1197, %v1245
  %1247 = vmatmul.bf16.gmra.mxu0 %v333
  %v1248 = vpop.f32.mrf.mxu0
  %v1249 = vadd.f32 %v1200, %v1248
  %v1250 = vpop.f32.mrf.mxu0
  %v1251 = vadd.f32 %v1202, %v1250
  %1252 = vmatmul.bf16.gmra.mxu0 %v336
  %v1253 = vpop.f32.mrf.mxu0
  %v1254 = vadd.f32 %v1205, %v1253
  %v1255 = vpop.f32.mrf.mxu0
  %v1256 = vadd.f32 %v1207, %v1255
  %1257 = vmatmul.bf16.gmra.mxu0 %v339
  %v1258 = vpop.f32.mrf.mxu0
  %v1259 = vadd.f32 %v1210, %v1258
  %v1260 = vpop.f32.mrf.mxu0
  %v1261 = vadd.f32 %v1212, %v1260
  %1262 = vmatmul.bf16.gmra.mxu0 %v342
  %v1263 = vpop.f32.mrf.mxu0
  %v1264 = vadd.f32 %v1215, %v1263
  %v1265 = vpop.f32.mrf.mxu0
  %v1266 = vadd.f32 %v1217, %v1265
  %1267 = vmatmul.bf16.gmra.mxu0 %v345
  %v1268 = vpop.f32.mrf.mxu0
  %v1269 = vadd.f32 %v1220, %v1268
  %v1270 = vpop.f32.mrf.mxu0
  %v1271 = vadd.f32 %v1222, %v1270
  %1272 = vmatmul.bf16.gmra.mxu0 %v348
  %v1273 = vpop.f32.mrf.mxu0
  %v1274 = vadd.f32 %v1225, %v1273
  %v1275 = vpop.f32.mrf.mxu0
  %v1276 = vadd.f32 %v1227, %v1275
  %1277 = vdwg.mxu0
  %v1278 = vmax.f32 %v945, 0.0
  %v1279 = vmax.f32 %v1092, 0.0
  %v1280 = vmax.f32 %v1239, 0.0
  %v1281 = vmax.f32 %v947, 0.0
  %v1282 = vmax.f32 %v1094, 0.0
  %v1283 = vmax.f32 %v1241, 0.0
  %v1284 = vmax.f32 %v950, 0.0
  %v1285 = vmax.f32 %v1097, 0.0
  %v1286 = vmax.f32 %v1244, 0.0
  %v1287 = vmax.f32 %v952, 0.0
  %v1288 = vmax.f32 %v1099, 0.0
  %v1289 = vmax.f32 %v1246, 0.0
  %v1290 = vmax.f32 %v955, 0.0
  %v1291 = vmax.f32 %v1102, 0.0
  %v1292 = vmax.f32 %v1249, 0.0
  %v1293 = vmax.f32 %v957, 0.0
  %v1294 = vmax.f32 %v1104, 0.0
  %v1295 = vmax.f32 %v1251, 0.0
  %v1296 = vmax.f32 %v960, 0.0
  %v1297 = vmax.f32 %v1107, 0.0
  %v1298 = vmax.f32 %v1254, 0.0
  %v1299 = vmax.f32 %v962, 0.0
  %v1300 = vmax.f32 %v1109, 0.0
  %v1301 = vmax.f32 %v1256, 0.0
  %v1302 = vmax.f32 %v965, 0.0
  %v1303 = vmax.f32 %v1112, 0.0
  %v1304 = vmax.f32 %v1259, 0.0
  %v1305 = vmax.f32 %v967, 0.0
  %v1306 = vmax.f32 %v1114, 0.0
  %v1307 = vmax.f32 %v1261, 0.0
  %v1308 = vmax.f32 %v970, 0.0
  %v1309 = vmax.f32 %v1117, 0.0
  %v1310 = vmax.f32 %v1264, 0.0
  %v1311 = vmax.f32 %v972, 0.0
  %v1312 = vmax.f32 %v1119, 0.0
  %v1313 = vmax.f32 %v1266, 0.0
  %v1314 = vmax.f32 %v975, 0.0
  %v1315 = vmax.f32 %v1122, 0.0
  %v1316 = vmax.f32 %v1269, 0.0
  %v1317 = vmax.f32 %v977, 0.0
  %v1318 = vmax.f32 %v1124, 0.0
  %v1319 = vmax.f32 %v1271, 0.0
  %v1320 = vmax.f32 %v980, 0.0
  %v1321 = vmax.f32 %v1127, 0.0
  %v1322 = vmax.f32 %v1274, 0.0
  %v1323 = vmax.f32 %v982, 0.0
  %v1324 = vmax.f32 %v1129, 0.0
  %v1325 = vmax.f32 %v1276, 0.0
  %v1326 = vpack.c.bf16 %v1281, %v1278
  %v1327 = vpack.c.bf16 %v1282, %v1279
  %v1328 = vpack.c.bf16 %v1283, %v1280
  %v1329 = vpack.c.bf16 %v1287, %v1284
  %v1330 = vpack.c.bf16 %v1288, %v1285
  %v1331 = vpack.c.bf16 %v1289, %v1286
  %v1332 = vpack.c.bf16 %v1293, %v1290
  %v1333 = vpack.c.bf16 %v1294, %v1291
  %v1334 = vpack.c.bf16 %v1295, %v1292
  %v1335 = vpack.c.bf16 %v1299, %v1296
  %v1336 = vpack.c.bf16 %v1300, %v1297
  %v1337 = vpack.c.bf16 %v1301, %v1298
  %v1338 = vpack.c.bf16 %v1305, %v1302
  %v1339 = vpack.c.bf16 %v1306, %v1303
  %v1340 = vpack.c.bf16 %v1307, %v1304
  %v1341 = vpack.c.bf16 %v1311, %v1308
  %v1342 = vpack.c.bf16 %v1312, %v1309
  %v1343 = vpack.c.bf16 %v1313, %v1310
  %v1344 = vpack.c.bf16 %v1317, %v1314
  %v1345 = vpack.c.bf16 %v1318, %v1315
  %v1346 = vpack.c.bf16 %v1319, %v1316
  %v1347 = vpack.c.bf16 %v1323, %v1320
  %v1348 = vpack.c.bf16 %v1324, %v1321
  %v1349 = vpack.c.bf16 %v1325, %v1322
  %v1350 = vld [vmem:[%s5] sm:$0xff]
  %v1351 = vld [vmem:[%s5 + $0x8] sm:$0xf]
  %v1352 = vld [vmem:[%s5 + $0xc] sm:$0xff]
  %v1353 = vld [vmem:[%s5 + $0x14] sm:$0xf]
  %v1354 = vld [vmem:[%s5 + $0x18] sm:$0xff]
  %v1355 = vld [vmem:[%s5 + $0x20] sm:$0xf]
  %v1356 = vld [vmem:[%s5 + $0x24] sm:$0xff]
  %v1357 = vld [vmem:[%s5 + $0x2c] sm:$0xf]
  %v1358 = vld [vmem:[%s5 + $0x30] sm:$0xff]
  %v1359 = vld [vmem:[%s5 + $0x38] sm:$0xf]
  %v1360 = vld [vmem:[%s5 + $0x3c] sm:$0xff]
  %v1361 = vld [vmem:[%s5 + $0x44] sm:$0xf]
  %v1362 = vld [vmem:[%s5 + $0x48] sm:$0xff]
  %v1363 = vld [vmem:[%s5 + $0x50] sm:$0xf]
  %v1364 = vld [vmem:[%s5 + $0x54] sm:$0xff]
  %v1365 = vld [vmem:[%s5 + $0x5c] sm:$0xf]
  %v1366 = vld [vmem:[%s5 + $0x60] sm:$0xff]
  %v1367 = vld [vmem:[%s5 + $0x68] sm:$0xf]
  %v1368 = vld [vmem:[%s5 + $0x6c] sm:$0xff]
  %v1369 = vld [vmem:[%s5 + $0x74] sm:$0xf]
  %v1370 = vld [vmem:[%s5 + $0x78] sm:$0xff]
  %v1371 = vld [vmem:[%s5 + $0x80] sm:$0xf]
  %v1372 = vld [vmem:[%s5 + $0x84] sm:$0xff]
  %v1373 = vld [vmem:[%s5 + $0x8c] sm:$0xf]
  %v1374 = vld [vmem:[%s5 + $0x90] sm:$0xff]
  %v1375 = vld [vmem:[%s5 + $0x98] sm:$0xf]
  %v1376 = vld [vmem:[%s5 + $0x9c] sm:$0xff]
  %v1377 = vld [vmem:[%s5 + $0xa4] sm:$0xf]
  %v1378 = vld [vmem:[%s5 + $0xa8] sm:$0xff]
  %v1379 = vld [vmem:[%s5 + $0xb0] sm:$0xf]
  %v1380 = vld [vmem:[%s5 + $0xb4] sm:$0xff]
  %v1381 = vld [vmem:[%s5 + $0xbc] sm:$0xf]
  %v1382 = vld [vmem:[%s5 + $0xc0] sm:$0xff]
  %v1383 = vld [vmem:[%s5 + $0xc8] sm:$0xf]
  %v1384 = vld [vmem:[%s5 + $0xcc] sm:$0xff]
  %v1385 = vld [vmem:[%s5 + $0xd4] sm:$0xf]
  %v1386 = vld [vmem:[%s5 + $0xd8] sm:$0xff]
  %v1387 = vld [vmem:[%s5 + $0xe0] sm:$0xf]
  %v1388 = vld [vmem:[%s5 + $0xe4] sm:$0xff]
  %v1389 = vld [vmem:[%s5 + $0xec] sm:$0xf]
  %v1390 = vld [vmem:[%s5 + $0xf0] sm:$0xff]
  %v1391 = vld [vmem:[%s5 + $0xf8] sm:$0xf]
  %v1392 = vld [vmem:[%s5 + $0xfc] sm:$0xff]
  %v1393 = vld [vmem:[%s5 + $0x104] sm:$0xf]
  %v1394 = vld [vmem:[%s5 + $0x108] sm:$0xff]
  %v1395 = vld [vmem:[%s5 + $0x110] sm:$0xf]
  %v1396 = vld [vmem:[%s5 + $0x114] sm:$0xff]
  %v1397 = vld [vmem:[%s5 + $0x11c] sm:$0xf]
  %v1398 = vld [vmem:[%s5 + $0x120] sm:$0xff]
  %v1399 = vld [vmem:[%s5 + $0x128] sm:$0xf]
  %v1400 = vld [vmem:[%s5 + $0x12c] sm:$0xff]
  %v1401 = vld [vmem:[%s5 + $0x134] sm:$0xf]
  %v1402 = vld [vmem:[%s5 + $0x138] sm:$0xff]
  %v1403 = vld [vmem:[%s5 + $0x140] sm:$0xf]
  %v1404 = vld [vmem:[%s5 + $0x144] sm:$0xff]
  %v1405 = vld [vmem:[%s5 + $0x14c] sm:$0xf]
  %v1406 = vld [vmem:[%s5 + $0x150] sm:$0xff]
  %v1407 = vld [vmem:[%s5 + $0x158] sm:$0xf]
  %v1408 = vld [vmem:[%s5 + $0x15c] sm:$0xff]
  %v1409 = vld [vmem:[%s5 + $0x164] sm:$0xf]
  %v1410 = vld [vmem:[%s5 + $0x168] sm:$0xff]
  %v1411 = vld [vmem:[%s5 + $0x170] sm:$0xf]
  %v1412 = vld [vmem:[%s5 + $0x174] sm:$0xff]
  %v1413 = vld [vmem:[%s5 + $0x17c] sm:$0xf]
  %v1414 = vld [vmem:[%s5 + $0x180] sm:$0xff]
  %v1415 = vld [vmem:[%s5 + $0x188] sm:$0xf]
  %v1416 = vld [vmem:[%s5 + $0x18c] sm:$0xff]
  %v1417 = vld [vmem:[%s5 + $0x194] sm:$0xf]
  %v1418 = vld [vmem:[%s5 + $0x198] sm:$0xff]
  %v1419 = vld [vmem:[%s5 + $0x1a0] sm:$0xf]
  %v1420 = vld [vmem:[%s5 + $0x1a4] sm:$0xff]
  %v1421 = vld [vmem:[%s5 + $0x1ac] sm:$0xf]
  %v1422 = vld [vmem:[%s5 + $0x1b0] sm:$0xff]
  %v1423 = vld [vmem:[%s5 + $0x1b8] sm:$0xf]
  %v1424 = vld [vmem:[%s5 + $0x1bc] sm:$0xff]
  %v1425 = vld [vmem:[%s5 + $0x1c4] sm:$0xf]
  %v1426 = vld [vmem:[%s5 + $0x1c8] sm:$0xff]
  %v1427 = vld [vmem:[%s5 + $0x1d0] sm:$0xf]
  %v1428 = vld [vmem:[%s5 + $0x1d4] sm:$0xff]
  %v1429 = vld [vmem:[%s5 + $0x1dc] sm:$0xf]
  %v1430 = vld [vmem:[%s5 + $0x1e0] sm:$0xff]
  %v1431 = vld [vmem:[%s5 + $0x1e8] sm:$0xf]
  %v1432 = vld [vmem:[%s5 + $0x1ec] sm:$0xff]
  %v1433 = vld [vmem:[%s5 + $0x1f4] sm:$0xf]
  %v1434 = vld [vmem:[%s5 + $0x1f8] sm:$0xff]
  %v1435 = vld [vmem:[%s5 + $0x200] sm:$0xf]
  %v1436 = vld [vmem:[%s5 + $0x204] sm:$0xff]
  %v1437 = vld [vmem:[%s5 + $0x20c] sm:$0xf]
  %v1438 = vld [vmem:[%s5 + $0x210] sm:$0xff]
  %v1439 = vld [vmem:[%s5 + $0x218] sm:$0xf]
  %v1440 = vld [vmem:[%s5 + $0x21c] sm:$0xff]
  %v1441 = vld [vmem:[%s5 + $0x224] sm:$0xf]
  %v1442 = vld [vmem:[%s5 + $0x228] sm:$0xff]
  %v1443 = vld [vmem:[%s5 + $0x230] sm:$0xf]
  %v1444 = vld [vmem:[%s5 + $0x234] sm:$0xff]
  %v1445 = vld [vmem:[%s5 + $0x23c] sm:$0xf]
  %v1446 = vld [vmem:[%s6] sm:$0x7]
  %v1448 = vperm.slane %v1446, 0
  %v1449 = vperm.slane %v1446, 1
  %v1450 = vperm.slane %v1446, 2
  %v1550 = vunpack.c.l.b16 %v1350
  %v1551 = vunpack.c.h.b16 %v1350
  %v1552 = vunpack.c.l.b16 %v1351
  %v1553 = vunpack.c.l.b16 %v1352
  %v1554 = vunpack.c.h.b16 %v1352
  %v1555 = vunpack.c.l.b16 %v1353
  %v1556 = vunpack.c.l.b16 %v1354
  %v1557 = vunpack.c.h.b16 %v1354
  %v1558 = vunpack.c.l.b16 %v1355
  %v1559 = vunpack.c.l.b16 %v1356
  %v1560 = vunpack.c.h.b16 %v1356
  %v1561 = vunpack.c.l.b16 %v1357
  %v1562 = vunpack.c.l.b16 %v1358
  %v1563 = vunpack.c.h.b16 %v1358
  %v1564 = vunpack.c.l.b16 %v1359
  %v1565 = vunpack.c.l.b16 %v1360
  %v1566 = vunpack.c.h.b16 %v1360
  %v1567 = vunpack.c.l.b16 %v1361
  %v1568 = vunpack.c.l.b16 %v1362
  %v1569 = vunpack.c.h.b16 %v1362
  %v1570 = vunpack.c.l.b16 %v1363
  %v1571 = vunpack.c.l.b16 %v1364
  %v1572 = vunpack.c.h.b16 %v1364
  %v1573 = vunpack.c.l.b16 %v1365
  %v1574 = vunpack.c.l.b16 %v1366
  %v1575 = vunpack.c.h.b16 %v1366
  %v1576 = vunpack.c.l.b16 %v1367
  %v1577 = vunpack.c.l.b16 %v1368
  %v1578 = vunpack.c.h.b16 %v1368
  %v1579 = vunpack.c.l.b16 %v1369
  %v1580 = vunpack.c.l.b16 %v1370
  %v1581 = vunpack.c.h.b16 %v1370
  %v1582 = vunpack.c.l.b16 %v1371
  %v1583 = vunpack.c.l.b16 %v1372
  %v1584 = vunpack.c.h.b16 %v1372
  %v1585 = vunpack.c.l.b16 %v1373
  %v1586 = vunpack.c.l.b16 %v1374
  %v1587 = vunpack.c.h.b16 %v1374
  %v1588 = vunpack.c.l.b16 %v1375
  %v1589 = vunpack.c.l.b16 %v1376
  %v1590 = vunpack.c.h.b16 %v1376
  %v1591 = vunpack.c.l.b16 %v1377
  %v1592 = vunpack.c.l.b16 %v1378
  %v1593 = vunpack.c.h.b16 %v1378
  %v1594 = vunpack.c.l.b16 %v1379
  %v1595 = vunpack.c.l.b16 %v1380
  %v1596 = vunpack.c.h.b16 %v1380
  %v1597 = vunpack.c.l.b16 %v1381
  %v1598 = vunpack.c.l.b16 %v1382
  %v1599 = vunpack.c.h.b16 %v1382
  %v1600 = vunpack.c.l.b16 %v1383
  %v1601 = vunpack.c.l.b16 %v1384
  %v1602 = vunpack.c.h.b16 %v1384
  %v1603 = vunpack.c.l.b16 %v1385
  %v1604 = vunpack.c.l.b16 %v1386
  %v1605 = vunpack.c.h.b16 %v1386
  %v1606 = vunpack.c.l.b16 %v1387
  %v1607 = vunpack.c.l.b16 %v1388
  %v1608 = vunpack.c.h.b16 %v1388
  %v1609 = vunpack.c.l.b16 %v1389
  %v1610 = vunpack.c.l.b16 %v1390
  %v1611 = vunpack.c.h.b16 %v1390
  %v1612 = vunpack.c.l.b16 %v1391
  %v1613 = vunpack.c.l.b16 %v1392
  %v1614 = vunpack.c.h.b16 %v1392
  %v1615 = vunpack.c.l.b16 %v1393
  %v1616 = vunpack.c.l.b16 %v1394
  %v1617 = vunpack.c.h.b16 %v1394
  %v1618 = vunpack.c.l.b16 %v1395
  %v1619 = vunpack.c.l.b16 %v1396
  %v1620 = vunpack.c.h.b16 %v1396
  %v1621 = vunpack.c.l.b16 %v1397
  %v1622 = vunpack.c.l.b16 %v1398
  %v1623 = vunpack.c.h.b16 %v1398
  %v1624 = vunpack.c.l.b16 %v1399
  %v1625 = vunpack.c.l.b16 %v1400
  %v1626 = vunpack.c.h.b16 %v1400
  %v1627 = vunpack.c.l.b16 %v1401
  %v1628 = vunpack.c.l.b16 %v1402
  %v1629 = vunpack.c.h.b16 %v1402
  %v1630 = vunpack.c.l.b16 %v1403
  %v1631 = vunpack.c.l.b16 %v1404
  %v1632 = vunpack.c.h.b16 %v1404
  %v1633 = vunpack.c.l.b16 %v1405
  %v1634 = vunpack.c.l.b16 %v1406
  %v1635 = vunpack.c.h.b16 %v1406
  %v1636 = vunpack.c.l.b16 %v1407
  %v1637 = vunpack.c.l.b16 %v1408
  %v1638 = vunpack.c.h.b16 %v1408
  %v1639 = vunpack.c.l.b16 %v1409
  %v1640 = vunpack.c.l.b16 %v1410
  %v1641 = vunpack.c.h.b16 %v1410
  %v1642 = vunpack.c.l.b16 %v1411
  %v1643 = vunpack.c.l.b16 %v1412
  %v1644 = vunpack.c.h.b16 %v1412
  %v1645 = vunpack.c.l.b16 %v1413
  %v1646 = vunpack.c.l.b16 %v1414
  %v1647 = vunpack.c.h.b16 %v1414
  %v1648 = vunpack.c.l.b16 %v1415
  %v1649 = vunpack.c.l.b16 %v1416
  %v1650 = vunpack.c.h.b16 %v1416
  %v1651 = vunpack.c.l.b16 %v1417
  %v1652 = vunpack.c.l.b16 %v1418
  %v1653 = vunpack.c.h.b16 %v1418
  %v1654 = vunpack.c.l.b16 %v1419
  %v1655 = vunpack.c.l.b16 %v1420
  %v1656 = vunpack.c.h.b16 %v1420
  %v1657 = vunpack.c.l.b16 %v1421
  %v1658 = vunpack.c.l.b16 %v1422
  %v1659 = vunpack.c.h.b16 %v1422
  %v1660 = vunpack.c.l.b16 %v1423
  %v1661 = vunpack.c.l.b16 %v1424
  %v1662 = vunpack.c.h.b16 %v1424
  %v1663 = vunpack.c.l.b16 %v1425
  %v1664 = vunpack.c.l.b16 %v1426
  %v1665 = vunpack.c.h.b16 %v1426
  %v1666 = vunpack.c.l.b16 %v1427
  %v1667 = vunpack.c.l.b16 %v1428
  %v1668 = vunpack.c.h.b16 %v1428
  %v1669 = vunpack.c.l.b16 %v1429
  %v1670 = vunpack.c.l.b16 %v1430
  %v1671 = vunpack.c.h.b16 %v1430
  %v1672 = vunpack.c.l.b16 %v1431
  %v1673 = vunpack.c.l.b16 %v1432
  %v1674 = vunpack.c.h.b16 %v1432
  %v1675 = vunpack.c.l.b16 %v1433
  %v1676 = vunpack.c.l.b16 %v1434
  %v1677 = vunpack.c.h.b16 %v1434
  %v1678 = vunpack.c.l.b16 %v1435
  %v1679 = vunpack.c.l.b16 %v1436
  %v1680 = vunpack.c.h.b16 %v1436
  %v1681 = vunpack.c.l.b16 %v1437
  %v1682 = vunpack.c.l.b16 %v1438
  %v1683 = vunpack.c.h.b16 %v1438
  %v1684 = vunpack.c.l.b16 %v1439
  %v1685 = vunpack.c.l.b16 %v1440
  %v1686 = vunpack.c.h.b16 %v1440
  %v1687 = vunpack.c.l.b16 %v1441
  %v1688 = vunpack.c.l.b16 %v1442
  %v1689 = vunpack.c.h.b16 %v1442
  %v1690 = vunpack.c.l.b16 %v1443
  %v1691 = vunpack.c.l.b16 %v1444
  %v1692 = vunpack.c.h.b16 %v1444
  %v1693 = vunpack.c.l.b16 %v1445
  %v1694 = vpack.c.b16 %v1553, %v1550
  %v1695 = vpack.c.b16 %v1554, %v1551
  %v1696 = vpack.c.b16 %v1555, %v1552
  %v1697 = vpack.c.b16 %v1559, %v1556
  %v1698 = vpack.c.b16 %v1560, %v1557
  %v1699 = vpack.c.b16 %v1561, %v1558
  %v1700 = vpack.c.b16 %v1565, %v1562
  %v1701 = vpack.c.b16 %v1566, %v1563
  %v1702 = vpack.c.b16 %v1567, %v1564
  %v1703 = vpack.c.b16 %v1571, %v1568
  %v1704 = vpack.c.b16 %v1572, %v1569
  %v1705 = vpack.c.b16 %v1573, %v1570
  %v1706 = vpack.c.b16 %v1577, %v1574
  %v1707 = vpack.c.b16 %v1578, %v1575
  %v1708 = vpack.c.b16 %v1579, %v1576
  %v1709 = vpack.c.b16 %v1583, %v1580
  %v1710 = vpack.c.b16 %v1584, %v1581
  %v1711 = vpack.c.b16 %v1585, %v1582
  %v1712 = vpack.c.b16 %v1589, %v1586
  %v1713 = vpack.c.b16 %v1590, %v1587
  %v1714 = vpack.c.b16 %v1591, %v1588
  %v1715 = vpack.c.b16 %v1595, %v1592
  %v1716 = vpack.c.b16 %v1596, %v1593
  %v1717 = vpack.c.b16 %v1597, %v1594
  %v1718 = vpack.c.b16 %v1601, %v1598
  %v1719 = vpack.c.b16 %v1602, %v1599
  %v1720 = vpack.c.b16 %v1603, %v1600
  %v1721 = vpack.c.b16 %v1607, %v1604
  %v1722 = vpack.c.b16 %v1608, %v1605
  %v1723 = vpack.c.b16 %v1609, %v1606
  %v1724 = vpack.c.b16 %v1613, %v1610
  %v1725 = vpack.c.b16 %v1614, %v1611
  %v1726 = vpack.c.b16 %v1615, %v1612
  %v1727 = vpack.c.b16 %v1619, %v1616
  %v1728 = vpack.c.b16 %v1620, %v1617
  %v1729 = vpack.c.b16 %v1621, %v1618
  %v1730 = vpack.c.b16 %v1625, %v1622
  %v1731 = vpack.c.b16 %v1626, %v1623
  %v1732 = vpack.c.b16 %v1627, %v1624
  %v1733 = vpack.c.b16 %v1631, %v1628
  %v1734 = vpack.c.b16 %v1632, %v1629
  %v1735 = vpack.c.b16 %v1633, %v1630
  %v1736 = vpack.c.b16 %v1637, %v1634
  %v1737 = vpack.c.b16 %v1638, %v1635
  %v1738 = vpack.c.b16 %v1639, %v1636
  %v1739 = vpack.c.b16 %v1643, %v1640
  %v1740 = vpack.c.b16 %v1644, %v1641
  %v1741 = vpack.c.b16 %v1645, %v1642
  %v1742 = vpack.c.b16 %v1649, %v1646
  %v1743 = vpack.c.b16 %v1650, %v1647
  %v1744 = vpack.c.b16 %v1651, %v1648
  %v1745 = vpack.c.b16 %v1655, %v1652
  %v1746 = vpack.c.b16 %v1656, %v1653
  %v1747 = vpack.c.b16 %v1657, %v1654
  %v1748 = vpack.c.b16 %v1661, %v1658
  %v1749 = vpack.c.b16 %v1662, %v1659
  %v1750 = vpack.c.b16 %v1663, %v1660
  %v1751 = vpack.c.b16 %v1667, %v1664
  %v1752 = vpack.c.b16 %v1668, %v1665
  %v1753 = vpack.c.b16 %v1669, %v1666
  %v1754 = vpack.c.b16 %v1673, %v1670
  %v1755 = vpack.c.b16 %v1674, %v1671
  %v1756 = vpack.c.b16 %v1675, %v1672
  %v1757 = vpack.c.b16 %v1679, %v1676
  %v1758 = vpack.c.b16 %v1680, %v1677
  %v1759 = vpack.c.b16 %v1681, %v1678
  %v1760 = vpack.c.b16 %v1685, %v1682
  %v1761 = vpack.c.b16 %v1686, %v1683
  %v1762 = vpack.c.b16 %v1687, %v1684
  %v1763 = vpack.c.b16 %v1691, %v1688
  %v1764 = vpack.c.b16 %v1692, %v1689
  %v1765 = vpack.c.b16 %v1693, %v1690
  %1838 = vmatpush.bf16.msra.mxu0 %v1715
  %1839 = vmatpush.bf16.msra.mxu0 %v1712
  %1840 = vmatpush.bf16.msra.mxu0 %v1709
  %1841 = vmatpush.bf16.msra.mxu0 %v1706
  %1842 = vmatpush.bf16.msra.mxu0 %v1703
  %1843 = vmatpush.bf16.msra.mxu0 %v1700
  %1844 = vmatpush.bf16.msra.mxu0 %v1697
  %1845 = vmatpush.bf16.msra.mxu0 %v1694
  %1846 = vmatmul.bf16.gmra.mxu0 %v1326
  %v1847 = vpop.f32.mrf.mxu0
  %v1848 = vadd.f32 %v1448, %v1847
  %v1849 = vpop.f32.mrf.mxu0
  %v1850 = vadd.f32 %v1448, %v1849
  %1851 = vmatmul.bf16.gmra.mxu0 %v1329
  %v1852 = vpop.f32.mrf.mxu0
  %v1853 = vadd.f32 %v1448, %v1852
  %v1854 = vpop.f32.mrf.mxu0
  %v1855 = vadd.f32 %v1448, %v1854
  %1856 = vmatmul.bf16.gmra.mxu0 %v1332
  %v1857 = vpop.f32.mrf.mxu0
  %v1858 = vadd.f32 %v1448, %v1857
  %v1859 = vpop.f32.mrf.mxu0
  %v1860 = vadd.f32 %v1448, %v1859
  %1861 = vmatmul.bf16.gmra.mxu0 %v1335
  %v1862 = vpop.f32.mrf.mxu0
  %v1863 = vadd.f32 %v1448, %v1862
  %v1864 = vpop.f32.mrf.mxu0
  %v1865 = vadd.f32 %v1448, %v1864
  %1866 = vmatmul.bf16.gmra.mxu0 %v1338
  %v1867 = vpop.f32.mrf.mxu0
  %v1868 = vadd.f32 %v1448, %v1867
  %v1869 = vpop.f32.mrf.mxu0
  %v1870 = vadd.f32 %v1448, %v1869
  %1871 = vmatmul.bf16.gmra.mxu0 %v1341
  %v1872 = vpop.f32.mrf.mxu0
  %v1873 = vadd.f32 %v1448, %v1872
  %v1874 = vpop.f32.mrf.mxu0
  %v1875 = vadd.f32 %v1448, %v1874
  %1876 = vmatmul.bf16.gmra.mxu0 %v1344
  %v1877 = vpop.f32.mrf.mxu0
  %v1878 = vadd.f32 %v1448, %v1877
  %v1879 = vpop.f32.mrf.mxu0
  %v1880 = vadd.f32 %v1448, %v1879
  %1881 = vmatmul.bf16.gmra.mxu0 %v1347
  %v1882 = vpop.f32.mrf.mxu0
  %v1883 = vadd.f32 %v1448, %v1882
  %v1884 = vpop.f32.mrf.mxu0
  %v1885 = vadd.f32 %v1448, %v1884
  %1886 = vdwg.mxu0
  %1887 = vmatpush.bf16.msra.mxu0 %v1739
  %1888 = vmatpush.bf16.msra.mxu0 %v1736
  %1889 = vmatpush.bf16.msra.mxu0 %v1733
  %1890 = vmatpush.bf16.msra.mxu0 %v1730
  %1891 = vmatpush.bf16.msra.mxu0 %v1727
  %1892 = vmatpush.bf16.msra.mxu0 %v1724
  %1893 = vmatpush.bf16.msra.mxu0 %v1721
  %1894 = vmatpush.bf16.msra.mxu0 %v1718
  %1895 = vmatmul.bf16.gmra.mxu0 %v1327
  %v1896 = vpop.f32.mrf.mxu0
  %v1897 = vadd.f32 %v1848, %v1896
  %v1898 = vpop.f32.mrf.mxu0
  %v1899 = vadd.f32 %v1850, %v1898
  %1900 = vmatmul.bf16.gmra.mxu0 %v1330
  %v1901 = vpop.f32.mrf.mxu0
  %v1902 = vadd.f32 %v1853, %v1901
  %v1903 = vpop.f32.mrf.mxu0
  %v1904 = vadd.f32 %v1855, %v1903
  %1905 = vmatmul.bf16.gmra.mxu0 %v1333
  %v1906 = vpop.f32.mrf.mxu0
  %v1907 = vadd.f32 %v1858, %v1906
  %v1908 = vpop.f32.mrf.mxu0
  %v1909 = vadd.f32 %v1860, %v1908
  %1910 = vmatmul.bf16.gmra.mxu0 %v1336
  %v1911 = vpop.f32.mrf.mxu0
  %v1912 = vadd.f32 %v1863, %v1911
  %v1913 = vpop.f32.mrf.mxu0
  %v1914 = vadd.f32 %v1865, %v1913
  %1915 = vmatmul.bf16.gmra.mxu0 %v1339
  %v1916 = vpop.f32.mrf.mxu0
  %v1917 = vadd.f32 %v1868, %v1916
  %v1918 = vpop.f32.mrf.mxu0
  %v1919 = vadd.f32 %v1870, %v1918
  %1920 = vmatmul.bf16.gmra.mxu0 %v1342
  %v1921 = vpop.f32.mrf.mxu0
  %v1922 = vadd.f32 %v1873, %v1921
  %v1923 = vpop.f32.mrf.mxu0
  %v1924 = vadd.f32 %v1875, %v1923
  %1925 = vmatmul.bf16.gmra.mxu0 %v1345
  %v1926 = vpop.f32.mrf.mxu0
  %v1927 = vadd.f32 %v1878, %v1926
  %v1928 = vpop.f32.mrf.mxu0
  %v1929 = vadd.f32 %v1880, %v1928
  %1930 = vmatmul.bf16.gmra.mxu0 %v1348
  %v1931 = vpop.f32.mrf.mxu0
  %v1932 = vadd.f32 %v1883, %v1931
  %v1933 = vpop.f32.mrf.mxu0
  %v1934 = vadd.f32 %v1885, %v1933
  %1935 = vdwg.mxu0
  %1936 = vmatpush.bf16.msra.mxu0 %v1763
  %1937 = vmatpush.bf16.msra.mxu0 %v1760
  %1938 = vmatpush.bf16.msra.mxu0 %v1757
  %1939 = vmatpush.bf16.msra.mxu0 %v1754
  %1940 = vmatpush.bf16.msra.mxu0 %v1751
  %1941 = vmatpush.bf16.msra.mxu0 %v1748
  %1942 = vmatpush.bf16.msra.mxu0 %v1745
  %1943 = vmatpush.bf16.msra.mxu0 %v1742
  %1944 = vmatmul.bf16.gmra.mxu0 %v1328
  %v1945 = vpop.f32.mrf.mxu0
  %v1946 = vadd.f32 %v1897, %v1945
  %v1947 = vpop.f32.mrf.mxu0
  %v1948 = vadd.f32 %v1899, %v1947
  %1949 = vmatmul.bf16.gmra.mxu0 %v1331
  %v1950 = vpop.f32.mrf.mxu0
  %v1951 = vadd.f32 %v1902, %v1950
  %v1952 = vpop.f32.mrf.mxu0
  %v1953 = vadd.f32 %v1904, %v1952
  %1954 = vmatmul.bf16.gmra.mxu0 %v1334
  %v1955 = vpop.f32.mrf.mxu0
  %v1956 = vadd.f32 %v1907, %v1955
  %v1957 = vpop.f32.mrf.mxu0
  %v1958 = vadd.f32 %v1909, %v1957
  %1959 = vmatmul.bf16.gmra.mxu0 %v1337
  %v1960 = vpop.f32.mrf.mxu0
  %v1961 = vadd.f32 %v1912, %v1960
  %v1962 = vpop.f32.mrf.mxu0
  %v1963 = vadd.f32 %v1914, %v1962
  %1964 = vmatmul.bf16.gmra.mxu0 %v1340
  %v1965 = vpop.f32.mrf.mxu0
  %v1966 = vadd.f32 %v1917, %v1965
  %v1967 = vpop.f32.mrf.mxu0
  %v1968 = vadd.f32 %v1919, %v1967
  %1969 = vmatmul.bf16.gmra.mxu0 %v1343
  %v1970 = vpop.f32.mrf.mxu0
  %v1971 = vadd.f32 %v1922, %v1970
  %v1972 = vpop.f32.mrf.mxu0
  %v1973 = vadd.f32 %v1924, %v1972
  %1974 = vmatmul.bf16.gmra.mxu0 %v1346
  %v1975 = vpop.f32.mrf.mxu0
  %v1976 = vadd.f32 %v1927, %v1975
  %v1977 = vpop.f32.mrf.mxu0
  %v1978 = vadd.f32 %v1929, %v1977
  %1979 = vmatmul.bf16.gmra.mxu0 %v1349
  %v1980 = vpop.f32.mrf.mxu0
  %v1981 = vadd.f32 %v1932, %v1980
  %v1982 = vpop.f32.mrf.mxu0
  %v1983 = vadd.f32 %v1934, %v1982
  %1984 = vdwg.mxu0
  %1985 = vmatpush.bf16.msra.mxu0 %v1716
  %1986 = vmatpush.bf16.msra.mxu0 %v1713
  %1987 = vmatpush.bf16.msra.mxu0 %v1710
  %1988 = vmatpush.bf16.msra.mxu0 %v1707
  %1989 = vmatpush.bf16.msra.mxu0 %v1704
  %1990 = vmatpush.bf16.msra.mxu0 %v1701
  %1991 = vmatpush.bf16.msra.mxu0 %v1698
  %1992 = vmatpush.bf16.msra.mxu0 %v1695
  %1993 = vmatmul.bf16.gmra.mxu0 %v1326
  %v1994 = vpop.f32.mrf.mxu0
  %v1995 = vadd.f32 %v1449, %v1994
  %v1996 = vpop.f32.mrf.mxu0
  %v1997 = vadd.f32 %v1449, %v1996
  %1998 = vmatmul.bf16.gmra.mxu0 %v1329
  %v1999 = vpop.f32.mrf.mxu0
  %v2000 = vadd.f32 %v1449, %v1999
  %v2001 = vpop.f32.mrf.mxu0
  %v2002 = vadd.f32 %v1449, %v2001
  %2003 = vmatmul.bf16.gmra.mxu0 %v1332
  %v2004 = vpop.f32.mrf.mxu0
  %v2005 = vadd.f32 %v1449, %v2004
  %v2006 = vpop.f32.mrf.mxu0
  %v2007 = vadd.f32 %v1449, %v2006
  %2008 = vmatmul.bf16.gmra.mxu0 %v1335
  %v2009 = vpop.f32.mrf.mxu0
  %v2010 = vadd.f32 %v1449, %v2009
  %v2011 = vpop.f32.mrf.mxu0
  %v2012 = vadd.f32 %v1449, %v2011
  %2013 = vmatmul.bf16.gmra.mxu0 %v1338
  %v2014 = vpop.f32.mrf.mxu0
  %v2015 = vadd.f32 %v1449, %v2014
  %v2016 = vpop.f32.mrf.mxu0
  %v2017 = vadd.f32 %v1449, %v2016
  %2018 = vmatmul.bf16.gmra.mxu0 %v1341
  %v2019 = vpop.f32.mrf.mxu0
  %v2020 = vadd.f32 %v1449, %v2019
  %v2021 = vpop.f32.mrf.mxu0
  %v2022 = vadd.f32 %v1449, %v2021
  %2023 = vmatmul.bf16.gmra.mxu0 %v1344
  %v2024 = vpop.f32.mrf.mxu0
  %v2025 = vadd.f32 %v1449, %v2024
  %v2026 = vpop.f32.mrf.mxu0
  %v2027 = vadd.f32 %v1449, %v2026
  %2028 = vmatmul.bf16.gmra.mxu0 %v1347
  %v2029 = vpop.f32.mrf.mxu0
  %v2030 = vadd.f32 %v1449, %v2029
  %v2031 = vpop.f32.mrf.mxu0
  %v2032 = vadd.f32 %v1449, %v2031
  %2033 = vdwg.mxu0
  %2034 = vmatpush.bf16.msra.mxu0 %v1740
  %2035 = vmatpush.bf16.msra.mxu0 %v1737
  %2036 = vmatpush.bf16.msra.mxu0 %v1734
  %2037 = vmatpush.bf16.msra.mxu0 %v1731
  %2038 = vmatpush.bf16.msra.mxu0 %v1728
  %2039 = vmatpush.bf16.msra.mxu0 %v1725
  %2040 = vmatpush.bf16.msra.mxu0 %v1722
  %2041 = vmatpush.bf16.msra.mxu0 %v1719
  %2042 = vmatmul.bf16.gmra.mxu0 %v1327
  %v2043 = vpop.f32.mrf.mxu0
  %v2044 = vadd.f32 %v1995, %v2043
  %v2045 = vpop.f32.mrf.mxu0
  %v2046 = vadd.f32 %v1997, %v2045
  %2047 = vmatmul.bf16.gmra.mxu0 %v1330
  %v2048 = vpop.f32.mrf.mxu0
  %v2049 = vadd.f32 %v2000, %v2048
  %v2050 = vpop.f32.mrf.mxu0
  %v2051 = vadd.f32 %v2002, %v2050
  %2052 = vmatmul.bf16.gmra.mxu0 %v1333
  %v2053 = vpop.f32.mrf.mxu0
  %v2054 = vadd.f32 %v2005, %v2053
  %v2055 = vpop.f32.mrf.mxu0
  %v2056 = vadd.f32 %v2007, %v2055
  %2057 = vmatmul.bf16.gmra.mxu0 %v1336
  %v2058 = vpop.f32.mrf.mxu0
  %v2059 = vadd.f32 %v2010, %v2058
  %v2060 = vpop.f32.mrf.mxu0
  %v2061 = vadd.f32 %v2012, %v2060
  %2062 = vmatmul.bf16.gmra.mxu0 %v1339
  %v2063 = vpop.f32.mrf.mxu0
  %v2064 = vadd.f32 %v2015, %v2063
  %v2065 = vpop.f32.mrf.mxu0
  %v2066 = vadd.f32 %v2017, %v2065
  %2067 = vmatmul.bf16.gmra.mxu0 %v1342
  %v2068 = vpop.f32.mrf.mxu0
  %v2069 = vadd.f32 %v2020, %v2068
  %v2070 = vpop.f32.mrf.mxu0
  %v2071 = vadd.f32 %v2022, %v2070
  %2072 = vmatmul.bf16.gmra.mxu0 %v1345
  %v2073 = vpop.f32.mrf.mxu0
  %v2074 = vadd.f32 %v2025, %v2073
  %v2075 = vpop.f32.mrf.mxu0
  %v2076 = vadd.f32 %v2027, %v2075
  %2077 = vmatmul.bf16.gmra.mxu0 %v1348
  %v2078 = vpop.f32.mrf.mxu0
  %v2079 = vadd.f32 %v2030, %v2078
  %v2080 = vpop.f32.mrf.mxu0
  %v2081 = vadd.f32 %v2032, %v2080
  %2082 = vdwg.mxu0
  %2083 = vmatpush.bf16.msra.mxu0 %v1764
  %2084 = vmatpush.bf16.msra.mxu0 %v1761
  %2085 = vmatpush.bf16.msra.mxu0 %v1758
  %2086 = vmatpush.bf16.msra.mxu0 %v1755
  %2087 = vmatpush.bf16.msra.mxu0 %v1752
  %2088 = vmatpush.bf16.msra.mxu0 %v1749
  %2089 = vmatpush.bf16.msra.mxu0 %v1746
  %2090 = vmatpush.bf16.msra.mxu0 %v1743
  %2091 = vmatmul.bf16.gmra.mxu0 %v1328
  %v2092 = vpop.f32.mrf.mxu0
  %v2093 = vadd.f32 %v2044, %v2092
  %v2094 = vpop.f32.mrf.mxu0
  %v2095 = vadd.f32 %v2046, %v2094
  %2096 = vmatmul.bf16.gmra.mxu0 %v1331
  %v2097 = vpop.f32.mrf.mxu0
  %v2098 = vadd.f32 %v2049, %v2097
  %v2099 = vpop.f32.mrf.mxu0
  %v2100 = vadd.f32 %v2051, %v2099
  %2101 = vmatmul.bf16.gmra.mxu0 %v1334
  %v2102 = vpop.f32.mrf.mxu0
  %v2103 = vadd.f32 %v2054, %v2102
  %v2104 = vpop.f32.mrf.mxu0
  %v2105 = vadd.f32 %v2056, %v2104
  %2106 = vmatmul.bf16.gmra.mxu0 %v1337
  %v2107 = vpop.f32.mrf.mxu0
  %v2108 = vadd.f32 %v2059, %v2107
  %v2109 = vpop.f32.mrf.mxu0
  %v2110 = vadd.f32 %v2061, %v2109
  %2111 = vmatmul.bf16.gmra.mxu0 %v1340
  %v2112 = vpop.f32.mrf.mxu0
  %v2113 = vadd.f32 %v2064, %v2112
  %v2114 = vpop.f32.mrf.mxu0
  %v2115 = vadd.f32 %v2066, %v2114
  %2116 = vmatmul.bf16.gmra.mxu0 %v1343
  %v2117 = vpop.f32.mrf.mxu0
  %v2118 = vadd.f32 %v2069, %v2117
  %v2119 = vpop.f32.mrf.mxu0
  %v2120 = vadd.f32 %v2071, %v2119
  %2121 = vmatmul.bf16.gmra.mxu0 %v1346
  %v2122 = vpop.f32.mrf.mxu0
  %v2123 = vadd.f32 %v2074, %v2122
  %v2124 = vpop.f32.mrf.mxu0
  %v2125 = vadd.f32 %v2076, %v2124
  %2126 = vmatmul.bf16.gmra.mxu0 %v1349
  %v2127 = vpop.f32.mrf.mxu0
  %v2128 = vadd.f32 %v2079, %v2127
  %v2129 = vpop.f32.mrf.mxu0
  %v2130 = vadd.f32 %v2081, %v2129
  %2131 = vdwg.mxu0
  %2132 = vmatpush.bf16.msra.mxu0 %v1717
  %2133 = vmatpush.bf16.msra.mxu0 %v1714
  %2134 = vmatpush.bf16.msra.mxu0 %v1711
  %2135 = vmatpush.bf16.msra.mxu0 %v1708
  %2136 = vmatpush.bf16.msra.mxu0 %v1705
  %2137 = vmatpush.bf16.msra.mxu0 %v1702
  %2138 = vmatpush.bf16.msra.mxu0 %v1699
  %2139 = vmatpush.bf16.msra.mxu0 %v1696
  %2140 = vmatmul.bf16.gmra.mxu0 %v1326
  %v2141 = vpop.f32.mrf.mxu0
  %v2142 = vadd.f32 %v1450, %v2141
  %v2143 = vpop.f32.mrf.mxu0
  %v2144 = vadd.f32 %v1450, %v2143
  %2145 = vmatmul.bf16.gmra.mxu0 %v1329
  %v2146 = vpop.f32.mrf.mxu0
  %v2147 = vadd.f32 %v1450, %v2146
  %v2148 = vpop.f32.mrf.mxu0
  %v2149 = vadd.f32 %v1450, %v2148
  %2150 = vmatmul.bf16.gmra.mxu0 %v1332
  %v2151 = vpop.f32.mrf.mxu0
  %v2152 = vadd.f32 %v1450, %v2151
  %v2153 = vpop.f32.mrf.mxu0
  %v2154 = vadd.f32 %v1450, %v2153
  %2155 = vmatmul.bf16.gmra.mxu0 %v1335
  %v2156 = vpop.f32.mrf.mxu0
  %v2157 = vadd.f32 %v1450, %v2156
  %v2158 = vpop.f32.mrf.mxu0
  %v2159 = vadd.f32 %v1450, %v2158
  %2160 = vmatmul.bf16.gmra.mxu0 %v1338
  %v2161 = vpop.f32.mrf.mxu0
  %v2162 = vadd.f32 %v1450, %v2161
  %v2163 = vpop.f32.mrf.mxu0
  %v2164 = vadd.f32 %v1450, %v2163
  %2165 = vmatmul.bf16.gmra.mxu0 %v1341
  %v2166 = vpop.f32.mrf.mxu0
  %v2167 = vadd.f32 %v1450, %v2166
  %v2168 = vpop.f32.mrf.mxu0
  %v2169 = vadd.f32 %v1450, %v2168
  %2170 = vmatmul.bf16.gmra.mxu0 %v1344
  %v2171 = vpop.f32.mrf.mxu0
  %v2172 = vadd.f32 %v1450, %v2171
  %v2173 = vpop.f32.mrf.mxu0
  %v2174 = vadd.f32 %v1450, %v2173
  %2175 = vmatmul.bf16.gmra.mxu0 %v1347
  %v2176 = vpop.f32.mrf.mxu0
  %v2177 = vadd.f32 %v1450, %v2176
  %v2178 = vpop.f32.mrf.mxu0
  %v2179 = vadd.f32 %v1450, %v2178
  %2180 = vdwg.mxu0
  %2181 = vmatpush.bf16.msra.mxu0 %v1741
  %2182 = vmatpush.bf16.msra.mxu0 %v1738
  %2183 = vmatpush.bf16.msra.mxu0 %v1735
  %2184 = vmatpush.bf16.msra.mxu0 %v1732
  %2185 = vmatpush.bf16.msra.mxu0 %v1729
  %2186 = vmatpush.bf16.msra.mxu0 %v1726
  %2187 = vmatpush.bf16.msra.mxu0 %v1723
  %2188 = vmatpush.bf16.msra.mxu0 %v1720
  %2189 = vmatmul.bf16.gmra.mxu0 %v1327
  %v2190 = vpop.f32.mrf.mxu0
  %v2191 = vadd.f32 %v2142, %v2190
  %v2192 = vpop.f32.mrf.mxu0
  %v2193 = vadd.f32 %v2144, %v2192
  %2194 = vmatmul.bf16.gmra.mxu0 %v1330
  %v2195 = vpop.f32.mrf.mxu0
  %v2196 = vadd.f32 %v2147, %v2195
  %v2197 = vpop.f32.mrf.mxu0
  %v2198 = vadd.f32 %v2149, %v2197
  %2199 = vmatmul.bf16.gmra.mxu0 %v1333
  %v2200 = vpop.f32.mrf.mxu0
  %v2201 = vadd.f32 %v2152, %v2200
  %v2202 = vpop.f32.mrf.mxu0
  %v2203 = vadd.f32 %v2154, %v2202
  %2204 = vmatmul.bf16.gmra.mxu0 %v1336
  %v2205 = vpop.f32.mrf.mxu0
  %v2206 = vadd.f32 %v2157, %v2205
  %v2207 = vpop.f32.mrf.mxu0
  %v2208 = vadd.f32 %v2159, %v2207
  %2209 = vmatmul.bf16.gmra.mxu0 %v1339
  %v2210 = vpop.f32.mrf.mxu0
  %v2211 = vadd.f32 %v2162, %v2210
  %v2212 = vpop.f32.mrf.mxu0
  %v2213 = vadd.f32 %v2164, %v2212
  %2214 = vmatmul.bf16.gmra.mxu0 %v1342
  %v2215 = vpop.f32.mrf.mxu0
  %v2216 = vadd.f32 %v2167, %v2215
  %v2217 = vpop.f32.mrf.mxu0
  %v2218 = vadd.f32 %v2169, %v2217
  %2219 = vmatmul.bf16.gmra.mxu0 %v1345
  %v2220 = vpop.f32.mrf.mxu0
  %v2221 = vadd.f32 %v2172, %v2220
  %v2222 = vpop.f32.mrf.mxu0
  %v2223 = vadd.f32 %v2174, %v2222
  %2224 = vmatmul.bf16.gmra.mxu0 %v1348
  %v2225 = vpop.f32.mrf.mxu0
  %v2226 = vadd.f32 %v2177, %v2225
  %v2227 = vpop.f32.mrf.mxu0
  %v2228 = vadd.f32 %v2179, %v2227
  %2229 = vdwg.mxu0
  %2230 = vmatpush.bf16.msra.mxu0 %v1765
  %2231 = vmatpush.bf16.msra.mxu0 %v1762
  %2232 = vmatpush.bf16.msra.mxu0 %v1759
  %2233 = vmatpush.bf16.msra.mxu0 %v1756
  %2234 = vmatpush.bf16.msra.mxu0 %v1753
  %2235 = vmatpush.bf16.msra.mxu0 %v1750
  %2236 = vmatpush.bf16.msra.mxu0 %v1747
  %2237 = vmatpush.bf16.msra.mxu0 %v1744
  %2238 = vmatmul.bf16.gmra.mxu0 %v1328
  %v2239 = vpop.f32.mrf.mxu0
  %v2240 = vadd.f32 %v2191, %v2239
  %v2241 = vpop.f32.mrf.mxu0
  %v2242 = vadd.f32 %v2193, %v2241
  %2243 = vmatmul.bf16.gmra.mxu0 %v1331
  %v2244 = vpop.f32.mrf.mxu0
  %v2245 = vadd.f32 %v2196, %v2244
  %v2246 = vpop.f32.mrf.mxu0
  %v2247 = vadd.f32 %v2198, %v2246
  %2248 = vmatmul.bf16.gmra.mxu0 %v1334
  %v2249 = vpop.f32.mrf.mxu0
  %v2250 = vadd.f32 %v2201, %v2249
  %v2251 = vpop.f32.mrf.mxu0
  %v2252 = vadd.f32 %v2203, %v2251
  %2253 = vmatmul.bf16.gmra.mxu0 %v1337
  %v2254 = vpop.f32.mrf.mxu0
  %v2255 = vadd.f32 %v2206, %v2254
  %v2256 = vpop.f32.mrf.mxu0
  %v2257 = vadd.f32 %v2208, %v2256
  %2258 = vmatmul.bf16.gmra.mxu0 %v1340
  %v2259 = vpop.f32.mrf.mxu0
  %v2260 = vadd.f32 %v2211, %v2259
  %v2261 = vpop.f32.mrf.mxu0
  %v2262 = vadd.f32 %v2213, %v2261
  %2263 = vmatmul.bf16.gmra.mxu0 %v1343
  %v2264 = vpop.f32.mrf.mxu0
  %v2265 = vadd.f32 %v2216, %v2264
  %v2266 = vpop.f32.mrf.mxu0
  %v2267 = vadd.f32 %v2218, %v2266
  %2268 = vmatmul.bf16.gmra.mxu0 %v1346
  %v2269 = vpop.f32.mrf.mxu0
  %v2270 = vadd.f32 %v2221, %v2269
  %v2271 = vpop.f32.mrf.mxu0
  %v2272 = vadd.f32 %v2223, %v2271
  %2273 = vmatmul.bf16.gmra.mxu0 %v1349
  %v2274 = vpop.f32.mrf.mxu0
  %v2275 = vadd.f32 %v2226, %v2274
  %v2276 = vpop.f32.mrf.mxu0
  %v2277 = vadd.f32 %v2228, %v2276
  %2278 = vdwg.mxu0
  %v2279 = vmax.f32 %v1946, 0.0
  %v2280 = vmax.f32 %v2093, 0.0
  %v2281 = vmax.f32 %v2240, 0.0
  %v2282 = vmax.f32 %v1948, 0.0
  %v2283 = vmax.f32 %v2095, 0.0
  %v2284 = vmax.f32 %v2242, 0.0
  %v2285 = vmax.f32 %v1951, 0.0
  %v2286 = vmax.f32 %v2098, 0.0
  %v2287 = vmax.f32 %v2245, 0.0
  %v2288 = vmax.f32 %v1953, 0.0
  %v2289 = vmax.f32 %v2100, 0.0
  %v2290 = vmax.f32 %v2247, 0.0
  %v2291 = vmax.f32 %v1956, 0.0
  %v2292 = vmax.f32 %v2103, 0.0
  %v2293 = vmax.f32 %v2250, 0.0
  %v2294 = vmax.f32 %v1958, 0.0
  %v2295 = vmax.f32 %v2105, 0.0
  %v2296 = vmax.f32 %v2252, 0.0
  %v2297 = vmax.f32 %v1961, 0.0
  %v2298 = vmax.f32 %v2108, 0.0
  %v2299 = vmax.f32 %v2255, 0.0
  %v2300 = vmax.f32 %v1963, 0.0
  %v2301 = vmax.f32 %v2110, 0.0
  %v2302 = vmax.f32 %v2257, 0.0
  %v2303 = vmax.f32 %v1966, 0.0
  %v2304 = vmax.f32 %v2113, 0.0
  %v2305 = vmax.f32 %v2260, 0.0
  %v2306 = vmax.f32 %v1968, 0.0
  %v2307 = vmax.f32 %v2115, 0.0
  %v2308 = vmax.f32 %v2262, 0.0
  %v2309 = vmax.f32 %v1971, 0.0
  %v2310 = vmax.f32 %v2118, 0.0
  %v2311 = vmax.f32 %v2265, 0.0
  %v2312 = vmax.f32 %v1973, 0.0
  %v2313 = vmax.f32 %v2120, 0.0
  %v2314 = vmax.f32 %v2267, 0.0
  %v2315 = vmax.f32 %v1976, 0.0
  %v2316 = vmax.f32 %v2123, 0.0
  %v2317 = vmax.f32 %v2270, 0.0
  %v2318 = vmax.f32 %v1978, 0.0
  %v2319 = vmax.f32 %v2125, 0.0
  %v2320 = vmax.f32 %v2272, 0.0
  %v2321 = vmax.f32 %v1981, 0.0
  %v2322 = vmax.f32 %v2128, 0.0
  %v2323 = vmax.f32 %v2275, 0.0
  %v2324 = vmax.f32 %v1983, 0.0
  %v2325 = vmax.f32 %v2130, 0.0
  %v2326 = vmax.f32 %v2277, 0.0
  %v2327 = vpack.c.bf16 %v2282, %v2279
  %v2328 = vpack.c.bf16 %v2283, %v2280
  %v2329 = vpack.c.bf16 %v2284, %v2281
  %v2330 = vpack.c.bf16 %v2288, %v2285
  %v2331 = vpack.c.bf16 %v2289, %v2286
  %v2332 = vpack.c.bf16 %v2290, %v2287
  %v2333 = vpack.c.bf16 %v2294, %v2291
  %v2334 = vpack.c.bf16 %v2295, %v2292
  %v2335 = vpack.c.bf16 %v2296, %v2293
  %v2336 = vpack.c.bf16 %v2300, %v2297
  %v2337 = vpack.c.bf16 %v2301, %v2298
  %v2338 = vpack.c.bf16 %v2302, %v2299
  %v2339 = vpack.c.bf16 %v2306, %v2303
  %v2340 = vpack.c.bf16 %v2307, %v2304
  %v2341 = vpack.c.bf16 %v2308, %v2305
  %v2342 = vpack.c.bf16 %v2312, %v2309
  %v2343 = vpack.c.bf16 %v2313, %v2310
  %v2344 = vpack.c.bf16 %v2314, %v2311
  %v2345 = vpack.c.bf16 %v2318, %v2315
  %v2346 = vpack.c.bf16 %v2319, %v2316
  %v2347 = vpack.c.bf16 %v2320, %v2317
  %v2348 = vpack.c.bf16 %v2324, %v2321
  %v2349 = vpack.c.bf16 %v2325, %v2322
  %v2350 = vpack.c.bf16 %v2326, %v2323
  %v2351 = vld [vmem:[%s7] sm:$0xf]
  %v2352 = vld [vmem:[%s7 + $0x4] sm:$0xf]
  %v2353 = vld [vmem:[%s7 + $0x8] sm:$0xf]
  %v2354 = vld [vmem:[%s7 + $0xc] sm:$0xf]
  %v2355 = vld [vmem:[%s7 + $0x10] sm:$0xf]
  %v2356 = vld [vmem:[%s7 + $0x14] sm:$0xf]
  %v2357 = vld [vmem:[%s7 + $0x18] sm:$0xf]
  %v2358 = vld [vmem:[%s7 + $0x1c] sm:$0xf]
  %v2359 = vld [vmem:[%s7 + $0x20] sm:$0xf]
  %v2360 = vld [vmem:[%s7 + $0x24] sm:$0xf]
  %v2361 = vld [vmem:[%s7 + $0x28] sm:$0xf]
  %v2362 = vld [vmem:[%s7 + $0x2c] sm:$0xf]
  %v2363 = vld [vmem:[%s7 + $0x30] sm:$0xf]
  %v2364 = vld [vmem:[%s7 + $0x34] sm:$0xf]
  %v2365 = vld [vmem:[%s7 + $0x38] sm:$0xf]
  %v2366 = vld [vmem:[%s7 + $0x3c] sm:$0xf]
  %v2367 = vld [vmem:[%s7 + $0x40] sm:$0xf]
  %v2368 = vld [vmem:[%s7 + $0x44] sm:$0xf]
  %v2369 = vld [vmem:[%s7 + $0x48] sm:$0xf]
  %v2370 = vld [vmem:[%s7 + $0x4c] sm:$0xf]
  %v2371 = vld [vmem:[%s7 + $0x50] sm:$0xf]
  %v2372 = vld [vmem:[%s7 + $0x54] sm:$0xf]
  %v2373 = vld [vmem:[%s7 + $0x58] sm:$0xf]
  %v2374 = vld [vmem:[%s7 + $0x5c] sm:$0xf]
  %v2375 = vld [vmem:[%s7 + $0x60] sm:$0xf]
  %v2376 = vld [vmem:[%s7 + $0x64] sm:$0xf]
  %v2377 = vld [vmem:[%s7 + $0x68] sm:$0xf]
  %v2378 = vld [vmem:[%s7 + $0x6c] sm:$0xf]
  %v2379 = vld [vmem:[%s7 + $0x70] sm:$0xf]
  %v2380 = vld [vmem:[%s7 + $0x74] sm:$0xf]
  %v2381 = vld [vmem:[%s7 + $0x78] sm:$0xf]
  %v2382 = vld [vmem:[%s7 + $0x7c] sm:$0xf]
  %v2383 = vld [vmem:[%s7 + $0x80] sm:$0xf]
  %v2384 = vld [vmem:[%s7 + $0x84] sm:$0xf]
  %v2385 = vld [vmem:[%s7 + $0x88] sm:$0xf]
  %v2386 = vld [vmem:[%s7 + $0x8c] sm:$0xf]
  %v2387 = vld [vmem:[%s7 + $0x90] sm:$0xf]
  %v2388 = vld [vmem:[%s7 + $0x94] sm:$0xf]
  %v2389 = vld [vmem:[%s7 + $0x98] sm:$0xf]
  %v2390 = vld [vmem:[%s7 + $0x9c] sm:$0xf]
  %v2391 = vld [vmem:[%s7 + $0xa0] sm:$0xf]
  %v2392 = vld [vmem:[%s7 + $0xa4] sm:$0xf]
  %v2393 = vld [vmem:[%s7 + $0xa8] sm:$0xf]
  %v2394 = vld [vmem:[%s7 + $0xac] sm:$0xf]
  %v2395 = vld [vmem:[%s7 + $0xb0] sm:$0xf]
  %v2396 = vld [vmem:[%s7 + $0xb4] sm:$0xf]
  %v2397 = vld [vmem:[%s7 + $0xb8] sm:$0xf]
  %v2398 = vld [vmem:[%s7 + $0xbc] sm:$0xf]
  %v2399 = vld [vmem:[%s8] sm:$0x1]
  %v2401 = vperm.slane %v2399, 0
  %v2451 = vunpack.c.l.b16 %v2351
  %v2452 = vunpack.c.l.b16 %v2352
  %v2453 = vunpack.c.l.b16 %v2353
  %v2454 = vunpack.c.l.b16 %v2354
  %v2455 = vunpack.c.l.b16 %v2355
  %v2456 = vunpack.c.l.b16 %v2356
  %v2457 = vunpack.c.l.b16 %v2357
  %v2458 = vunpack.c.l.b16 %v2358
  %v2459 = vunpack.c.l.b16 %v2359
  %v2460 = vunpack.c.l.b16 %v2360
  %v2461 = vunpack.c.l.b16 %v2361
  %v2462 = vunpack.c.l.b16 %v2362
  %v2463 = vunpack.c.l.b16 %v2363
  %v2464 = vunpack.c.l.b16 %v2364
  %v2465 = vunpack.c.l.b16 %v2365
  %v2466 = vunpack.c.l.b16 %v2366
  %v2467 = vunpack.c.l.b16 %v2367
  %v2468 = vunpack.c.l.b16 %v2368
  %v2469 = vunpack.c.l.b16 %v2369
  %v2470 = vunpack.c.l.b16 %v2370
  %v2471 = vunpack.c.l.b16 %v2371
  %v2472 = vunpack.c.l.b16 %v2372
  %v2473 = vunpack.c.l.b16 %v2373
  %v2474 = vunpack.c.l.b16 %v2374
  %v2475 = vunpack.c.l.b16 %v2375
  %v2476 = vunpack.c.l.b16 %v2376
  %v2477 = vunpack.c.l.b16 %v2377
  %v2478 = vunpack.c.l.b16 %v2378
  %v2479 = vunpack.c.l.b16 %v2379
  %v2480 = vunpack.c.l.b16 %v2380
  %v2481 = vunpack.c.l.b16 %v2381
  %v2482 = vunpack.c.l.b16 %v2382
  %v2483 = vunpack.c.l.b16 %v2383
  %v2484 = vunpack.c.l.b16 %v2384
  %v2485 = vunpack.c.l.b16 %v2385
  %v2486 = vunpack.c.l.b16 %v2386
  %v2487 = vunpack.c.l.b16 %v2387
  %v2488 = vunpack.c.l.b16 %v2388
  %v2489 = vunpack.c.l.b16 %v2389
  %v2490 = vunpack.c.l.b16 %v2390
  %v2491 = vunpack.c.l.b16 %v2391
  %v2492 = vunpack.c.l.b16 %v2392
  %v2493 = vunpack.c.l.b16 %v2393
  %v2494 = vunpack.c.l.b16 %v2394
  %v2495 = vunpack.c.l.b16 %v2395
  %v2496 = vunpack.c.l.b16 %v2396
  %v2497 = vunpack.c.l.b16 %v2397
  %v2498 = vunpack.c.l.b16 %v2398
  %v2499 = vpack.c.b16 %v2452, %v2451
  %v2500 = vpack.c.b16 %v2454, %v2453
  %v2501 = vpack.c.b16 %v2456, %v2455
  %v2502 = vpack.c.b16 %v2458, %v2457
  %v2503 = vpack.c.b16 %v2460, %v2459
  %v2504 = vpack.c.b16 %v2462, %v2461
  %v2505 = vpack.c.b16 %v2464, %v2463
  %v2506 = vpack.c.b16 %v2466, %v2465
  %v2507 = vpack.c.b16 %v2468, %v2467
  %v2508 = vpack.c.b16 %v2470, %v2469
  %v2509 = vpack.c.b16 %v2472, %v2471
  %v2510 = vpack.c.b16 %v2474, %v2473
  %v2511 = vpack.c.b16 %v2476, %v2475
  %v2512 = vpack.c.b16 %v2478, %v2477
  %v2513 = vpack.c.b16 %v2480, %v2479
  %v2514 = vpack.c.b16 %v2482, %v2481
  %v2515 = vpack.c.b16 %v2484, %v2483
  %v2516 = vpack.c.b16 %v2486, %v2485
  %v2517 = vpack.c.b16 %v2488, %v2487
  %v2518 = vpack.c.b16 %v2490, %v2489
  %v2519 = vpack.c.b16 %v2492, %v2491
  %v2520 = vpack.c.b16 %v2494, %v2493
  %v2521 = vpack.c.b16 %v2496, %v2495
  %v2522 = vpack.c.b16 %v2498, %v2497
  %2547 = vmatpush.bf16.msra.mxu0 %v2506
  %2548 = vmatpush.bf16.msra.mxu0 %v2505
  %2549 = vmatpush.bf16.msra.mxu0 %v2504
  %2550 = vmatpush.bf16.msra.mxu0 %v2503
  %2551 = vmatpush.bf16.msra.mxu0 %v2502
  %2552 = vmatpush.bf16.msra.mxu0 %v2501
  %2553 = vmatpush.bf16.msra.mxu0 %v2500
  %2554 = vmatpush.bf16.msra.mxu0 %v2499
  %2555 = vmatmul.bf16.gmra.mxu0 %v2327
  %v2556 = vpop.f32.mrf.mxu0
  %v2557 = vadd.f32 %v2401, %v2556
  %v2558 = vpop.f32.mrf.mxu0
  %v2559 = vadd.f32 %v2401, %v2558
  %2560 = vmatmul.bf16.gmra.mxu0 %v2330
  %v2561 = vpop.f32.mrf.mxu0
  %v2562 = vadd.f32 %v2401, %v2561
  %v2563 = vpop.f32.mrf.mxu0
  %v2564 = vadd.f32 %v2401, %v2563
  %2565 = vmatmul.bf16.gmra.mxu0 %v2333
  %v2566 = vpop.f32.mrf.mxu0
  %v2567 = vadd.f32 %v2401, %v2566
  %v2568 = vpop.f32.mrf.mxu0
  %v2569 = vadd.f32 %v2401, %v2568
  %2570 = vmatmul.bf16.gmra.mxu0 %v2336
  %v2571 = vpop.f32.mrf.mxu0
  %v2572 = vadd.f32 %v2401, %v2571
  %v2573 = vpop.f32.mrf.mxu0
  %v2574 = vadd.f32 %v2401, %v2573
  %2575 = vmatmul.bf16.gmra.mxu0 %v2339
  %v2576 = vpop.f32.mrf.mxu0
  %v2577 = vadd.f32 %v2401, %v2576
  %v2578 = vpop.f32.mrf.mxu0
  %v2579 = vadd.f32 %v2401, %v2578
  %2580 = vmatmul.bf16.gmra.mxu0 %v2342
  %v2581 = vpop.f32.mrf.mxu0
  %v2582 = vadd.f32 %v2401, %v2581
  %v2583 = vpop.f32.mrf.mxu0
  %v2584 = vadd.f32 %v2401, %v2583
  %2585 = vmatmul.bf16.gmra.mxu0 %v2345
  %v2586 = vpop.f32.mrf.mxu0
  %v2587 = vadd.f32 %v2401, %v2586
  %v2588 = vpop.f32.mrf.mxu0
  %v2589 = vadd.f32 %v2401, %v2588
  %2590 = vmatmul.bf16.gmra.mxu0 %v2348
  %v2591 = vpop.f32.mrf.mxu0
  %v2592 = vadd.f32 %v2401, %v2591
  %v2593 = vpop.f32.mrf.mxu0
  %v2594 = vadd.f32 %v2401, %v2593
  %2595 = vdwg.mxu0
  %2596 = vmatpush.bf16.msra.mxu0 %v2514
  %2597 = vmatpush.bf16.msra.mxu0 %v2513
  %2598 = vmatpush.bf16.msra.mxu0 %v2512
  %2599 = vmatpush.bf16.msra.mxu0 %v2511
  %2600 = vmatpush.bf16.msra.mxu0 %v2510
  %2601 = vmatpush.bf16.msra.mxu0 %v2509
  %2602 = vmatpush.bf16.msra.mxu0 %v2508
  %2603 = vmatpush.bf16.msra.mxu0 %v2507
  %2604 = vmatmul.bf16.gmra.mxu0 %v2328
  %v2605 = vpop.f32.mrf.mxu0
  %v2606 = vadd.f32 %v2557, %v2605
  %v2607 = vpop.f32.mrf.mxu0
  %v2608 = vadd.f32 %v2559, %v2607
  %2609 = vmatmul.bf16.gmra.mxu0 %v2331
  %v2610 = vpop.f32.mrf.mxu0
  %v2611 = vadd.f32 %v2562, %v2610
  %v2612 = vpop.f32.mrf.mxu0
  %v2613 = vadd.f32 %v2564, %v2612
  %2614 = vmatmul.bf16.gmra.mxu0 %v2334
  %v2615 = vpop.f32.mrf.mxu0
  %v2616 = vadd.f32 %v2567, %v2615
  %v2617 = vpop.f32.mrf.mxu0
  %v2618 = vadd.f32 %v2569, %v2617
  %2619 = vmatmul.bf16.gmra.mxu0 %v2337
  %v2620 = vpop.f32.mrf.mxu0
  %v2621 = vadd.f32 %v2572, %v2620
  %v2622 = vpop.f32.mrf.mxu0
  %v2623 = vadd.f32 %v2574, %v2622
  %2624 = vmatmul.bf16.gmra.mxu0 %v2340
  %v2625 = vpop.f32.mrf.mxu0
  %v2626 = vadd.f32 %v2577, %v2625
  %v2627 = vpop.f32.mrf.mxu0
  %v2628 = vadd.f32 %v2579, %v2627
  %2629 = vmatmul.bf16.gmra.mxu0 %v2343
  %v2630 = vpop.f32.mrf.mxu0
  %v2631 = vadd.f32 %v2582, %v2630
  %v2632 = vpop.f32.mrf.mxu0
  %v2633 = vadd.f32 %v2584, %v2632
  %2634 = vmatmul.bf16.gmra.mxu0 %v2346
  %v2635 = vpop.f32.mrf.mxu0
  %v2636 = vadd.f32 %v2587, %v2635
  %v2637 = vpop.f32.mrf.mxu0
  %v2638 = vadd.f32 %v2589, %v2637
  %2639 = vmatmul.bf16.gmra.mxu0 %v2349
  %v2640 = vpop.f32.mrf.mxu0
  %v2641 = vadd.f32 %v2592, %v2640
  %v2642 = vpop.f32.mrf.mxu0
  %v2643 = vadd.f32 %v2594, %v2642
  %2644 = vdwg.mxu0
  %2645 = vmatpush.bf16.msra.mxu0 %v2522
  %2646 = vmatpush.bf16.msra.mxu0 %v2521
  %2647 = vmatpush.bf16.msra.mxu0 %v2520
  %2648 = vmatpush.bf16.msra.mxu0 %v2519
  %2649 = vmatpush.bf16.msra.mxu0 %v2518
  %2650 = vmatpush.bf16.msra.mxu0 %v2517
  %2651 = vmatpush.bf16.msra.mxu0 %v2516
  %2652 = vmatpush.bf16.msra.mxu0 %v2515
  %2653 = vmatmul.bf16.gmra.mxu0 %v2329
  %v2654 = vpop.f32.mrf.mxu0
  %v2655 = vadd.f32 %v2606, %v2654
  %v2656 = vpop.f32.mrf.mxu0
  %v2657 = vadd.f32 %v2608, %v2656
  %2658 = vmatmul.bf16.gmra.mxu0 %v2332
  %v2659 = vpop.f32.mrf.mxu0
  %v2660 = vadd.f32 %v2611, %v2659
  %v2661 = vpop.f32.mrf.mxu0
  %v2662 = vadd.f32 %v2613, %v2661
  %2663 = vmatmul.bf16.gmra.mxu0 %v2335
  %v2664 = vpop.f32.mrf.mxu0
  %v2665 = vadd.f32 %v2616, %v2664
  %v2666 = vpop.f32.mrf.mxu0
  %v2667 = vadd.f32 %v2618, %v2666
  %2668 = vmatmul.bf16.gmra.mxu0 %v2338
  %v2669 = vpop.f32.mrf.mxu0
  %v2670 = vadd.f32 %v2621, %v2669
  %v2671 = vpop.f32.mrf.mxu0
  %v2672 = vadd.f32 %v2623, %v2671
  %2673 = vmatmul.bf16.gmra.mxu0 %v2341
  %v2674 = vpop.f32.mrf.mxu0
  %v2675 = vadd.f32 %v2626, %v2674
  %v2676 = vpop.f32.mrf.mxu0
  %v2677 = vadd.f32 %v2628, %v2676
  %2678 = vmatmul.bf16.gmra.mxu0 %v2344
  %v2679 = vpop.f32.mrf.mxu0
  %v2680 = vadd.f32 %v2631, %v2679
  %v2681 = vpop.f32.mrf.mxu0
  %v2682 = vadd.f32 %v2633, %v2681
  %2683 = vmatmul.bf16.gmra.mxu0 %v2347
  %v2684 = vpop.f32.mrf.mxu0
  %v2685 = vadd.f32 %v2636, %v2684
  %v2686 = vpop.f32.mrf.mxu0
  %v2687 = vadd.f32 %v2638, %v2686
  %2688 = vmatmul.bf16.gmra.mxu0 %v2350
  %v2689 = vpop.f32.mrf.mxu0
  %v2690 = vadd.f32 %v2641, %v2689
  %v2691 = vpop.f32.mrf.mxu0
  %v2692 = vadd.f32 %v2643, %v2691
  %2693 = vdwg.mxu0
  %vm2694 = vcmask 130048
  %2695 = vst.msk [vmem:[%s9] sm:$0xff] %vm2694, %v2655
  %2696 = vst.msk [vmem:[%s9 + $0x8] sm:$0xff] %vm2694, %v2657
  %2697 = vst.msk [vmem:[%s9 + $0x10] sm:$0xff] %vm2694, %v2660
  %2698 = vst.msk [vmem:[%s9 + $0x18] sm:$0xff] %vm2694, %v2662
  %2699 = vst.msk [vmem:[%s9 + $0x20] sm:$0xff] %vm2694, %v2665
  %2700 = vst.msk [vmem:[%s9 + $0x28] sm:$0xff] %vm2694, %v2667
  %2701 = vst.msk [vmem:[%s9 + $0x30] sm:$0xff] %vm2694, %v2670
  %2702 = vst.msk [vmem:[%s9 + $0x38] sm:$0xff] %vm2694, %v2672
  %2703 = vst.msk [vmem:[%s9 + $0x40] sm:$0xff] %vm2694, %v2675
  %2704 = vst.msk [vmem:[%s9 + $0x48] sm:$0xff] %vm2694, %v2677
  %2705 = vst.msk [vmem:[%s9 + $0x50] sm:$0xff] %vm2694, %v2680
  %2706 = vst.msk [vmem:[%s9 + $0x58] sm:$0xff] %vm2694, %v2682
  %2707 = vst.msk [vmem:[%s9 + $0x60] sm:$0xff] %vm2694, %v2685
  %2708 = vst.msk [vmem:[%s9 + $0x68] sm:$0xff] %vm2694, %v2687
  %2709 = vst.msk [vmem:[%s9 + $0x70] sm:$0xff] %vm2694, %v2690
  %2710 = vst.msk [vmem:[%s9 + $0x78] sm:$0xff] %vm2694, %v2692
  // Predicated region
  $region38: #{mlp_forward.1} parent=0 // pred_check
    _
  $region39: #{mlp_forward.1} parent=0 // pred_check_branch
    %2712 = sbr.rel (0) target = $region41
  $region40: #{mlp_forward.1} parent=0 // pred_region
    _
  $region41: #{mlp_forward.1} parent=0 // pred_fallthru
    _
  // Predicated region
  $region42: #{mlp_forward.1} parent=0 // pred_check
    _
  $region43: #{mlp_forward.1} parent=0 // pred_check_branch
    %2714 = sbr.rel (0) target = $region45
  $region44: #{mlp_forward.1} parent=0 // pred_region
    _
  $region45: #{mlp_forward.1} parent=0 // pred_fallthru
    _

</llo_original>
